<compile_context>
chip_gen: v6e
topology: v6e:2x2x1
jax: 0.10.0
libtpu: 0.0.40
codegen_flags: <defaults>
</compile_context>

<pallas_src>
import functools

import jax
import jax.numpy as jnp
import numpy as np
from jax.experimental import pallas as pl
from jax.experimental.pallas import tpu as pltpu


def _round_up(n, k):
    return (n + k - 1) // k * k


def _pad_to(a, target_shape):
    pads = [(0, t - s) for s, t in zip(a.shape, target_shape)]
    return jnp.pad(a, pads)


def drrnn_kernel(x_ref, w_in_ref, b_in_ref, w1_ref, b1_ref, w2_ref, b2_ref,
                 w_out_ref, b_out_ref, o_ref):
    """One batch tile of the full drrnn forward (weights resident in VMEM)."""
    x = x_ref[...].astype(jnp.float32)                       # (TB, IN_P)

    # boundary factor from the first three (real) input columns, kept narrow
    dx = x[:, 0:1]
    dy = x[:, 1:2]
    dz = x[:, 2:3]
    bfac = dx * dy * dz * (1.0 - dx) * (1.0 - dy)             # (TB, 1)

    def mm(a, w):
        # MXU matmul; operand dtype follows the weight dtype (f32 or bf16),
        # accumulation is always f32.
        return jnp.dot(a.astype(w.dtype), w, preferred_element_type=jnp.float32)

    # input linear (drrnn applies no activation between stack members)
    h = mm(x, w_in_ref[...]) + b_in_ref[...]

    # residual Blocks: h <- tanh(L2(tanh(L1(h)))) + h   (static unroll)
    depth = w1_ref.shape[0]
    for d in range(depth):
        t = jnp.tanh(mm(h, w1_ref[d]) + b1_ref[d])
        t = jnp.tanh(mm(t, w2_ref[d]) + b2_ref[d])
        h = t + h

    # output linear + boundary-condition factor (single lane-broadcast mul)
    y = (mm(h, w_out_ref[...]) + b_out_ref[...]) * bfac
    o_ref[...] = y.astype(o_ref.dtype)


@functools.partial(jax.jit, static_argnames=("tb", "weight_dtype"))
def drrnn_forward(x, w_in, b_in, w1s, b1s, w2s, b2s, w_out, b_out,
                  *, tb=256, weight_dtype=jnp.float32):
    """x: (B, 3); w_in: (3, m); b_in: (1, m); w1s/w2s: (depth, m, m);
    b1s/b2s: (depth, 1, m); w_out: (m, out_N); b_out: (1, out_N)."""
    B, in_N = x.shape
    assert in_N == 3, "drrnn chunks its input into 3 coordinate columns"
    m = w_in.shape[1]
    out_N = w_out.shape[1]
    depth = w1s.shape[0]

    LANE, SUB = 128, 8
    IN_P = _round_up(in_N, LANE)
    M_P = _round_up(m, LANE)
    OUT_P = _round_up(out_N, LANE)
    tb_eff = _round_up(min(tb, _round_up(B, SUB)), SUB)
    B_P = _round_up(B, tb_eff)
    grid = (B_P // tb_eff,)

    # Lane-dense, zero-padded operands (padding is mathematically inert:
    # padded hidden/output channels stay exactly zero through every layer).
    f32 = jnp.float32
    x_p = _pad_to(x, (B_P, IN_P))
    w_in_p = _pad_to(w_in.astype(weight_dtype), (IN_P, M_P))
    b_in_p = _pad_to(b_in.astype(f32), (1, M_P))
    w1_p = _pad_to(w1s.astype(weight_dtype), (depth, M_P, M_P))
    b1_p = _pad_to(b1s.astype(f32), (depth, 1, M_P))
    w2_p = _pad_to(w2s.astype(weight_dtype), (depth, M_P, M_P))
    b2_p = _pad_to(b2s.astype(f32), (depth, 1, M_P))
    w_out_p = _pad_to(w_out.astype(weight_dtype), (M_P, OUT_P))
    b_out_p = _pad_to(b_out.astype(f32), (1, OUT_P))

    def const_spec(shape):
        return pl.BlockSpec(shape, lambda i: (0,) * len(shape))

    in_specs = [
        pl.BlockSpec((tb_eff, IN_P), lambda i: (i, 0)),       # x (streamed)
        const_spec((IN_P, M_P)), const_spec((1, M_P)),        # input linear
        const_spec((depth, M_P, M_P)), const_spec((depth, 1, M_P)),  # Block L1
        const_spec((depth, M_P, M_P)), const_spec((depth, 1, M_P)),  # Block L2
        const_spec((M_P, OUT_P)), const_spec((1, OUT_P)),     # output linear
    ]
    out_specs = pl.BlockSpec((tb_eff, OUT_P), lambda i: (i, 0))

    # Alias the padded input to the output when shapes/dtypes match: block i of
    # x is fully in VMEM before block i of the output is written back to HBM.
    aliases = {0: 0} if (IN_P == OUT_P and x.dtype == jnp.float32) else {}

    out_p = pl.pallas_call(
        drrnn_kernel,
        out_shape=jax.ShapeDtypeStruct((B_P, OUT_P), x.dtype),
        grid=grid,
        in_specs=in_specs,
        out_specs=out_specs,
        input_output_aliases=aliases,
        compiler_params=pltpu.CompilerParams(
            dimension_semantics=("parallel",),   # v7x: shard tiles over 2 TCs
            vmem_limit_bytes=32 * 1024 * 1024,   # explicit, safe on v5e/v6e/v7x
        ),
    )(x_p, w_in_p, b_in_p, w1_p, b1_p, w2_p, b2_p, w_out_p, b_out_p)

    return out_p[:B, :out_N]


def _torch_linear_init(key, fan_in, fan_out):
    """Deterministic init matching nn.Linear's uniform(-1/sqrt(fan_in), +).
    Weight stored as [in, out] (transposed relative to PyTorch's [out, in])."""
    kw, kb = jax.random.split(key)
    bound = 1.0 / np.sqrt(fan_in)
    w = jax.random.uniform(kw, (fan_in, fan_out), jnp.float32, -bound, bound)
    b = jax.random.uniform(kb, (1, fan_out), jnp.float32, -bound, bound)
    return w, b


def drrnn_ref(x, w_in, b_in, w1s, b1s, w2s, b2s, w_out, b_out):
    """Pure-JAX reference matching drrnn.forward."""
    dx, dy, dz = x[:, 0:1], x[:, 1:2], x[:, 2:3]
    h = x @ w_in + b_in
    for d in range(w1s.shape[0]):
        t = jnp.tanh(h @ w1s[d] + b1s[d])
        t = jnp.tanh(t @ w2s[d] + b2s[d])
        h = t + h
    y = h @ w_out + b_out
    return y * dx * dy * dz * (1.0 - dx) * (1.0 - dy)


if __name__ == "__main__":
    key = jax.random.PRNGKey(0)

    # Small shapes consistent with the module: drrnn(in_N=3, m=32, depth=2, out_N=1)
    batch, in_N, m, depth, out_N = 300, 3, 32, 2, 1

    keys = jax.random.split(key, 3 + 2 * depth)
    k_x, k_in, k_out = keys[0], keys[1], keys[2]
    k_blocks = keys[3:]

    x = jax.random.uniform(k_x, (batch, in_N), jnp.float32, 0.0, 1.0)

    w_in, b_in = _torch_linear_init(k_in, in_N, m)
    w_out, b_out = _torch_linear_init(k_out, m, out_N)
    w1_list, b1_list, w2_list, b2_list = [], [], [], []
    for d in range(depth):
        w1, b1 = _torch_linear_init(k_blocks[2 * d], m, m)
        w2, b2 = _torch_linear_init(k_blocks[2 * d + 1], m, m)
        w1_list.append(w1); b1_list.append(b1)
        w2_list.append(w2); b2_list.append(b2)
    w1s, b1s = jnp.stack(w1_list), jnp.stack(b1_list)
    w2s, b2s = jnp.stack(w2_list), jnp.stack(b2_list)

    out = drrnn_forward(x, w_in, b_in, w1s, b1s, w2s, b2s, w_out, b_out, tb=256)
    out = jax.block_until_ready(out)

    ref = drrnn_ref(x, w_in, b_in, w1s, b1s, w2s, b2s, w_out, b_out)
    np.testing.assert_allclose(np.asarray(out), np.asarray(ref),
                               rtol=1e-4, atol=2e-5)

    print("KERNEL_OK")
</pallas_src>

<mosaic_0001>
module attributes {stable_mosaic.version = 11 : i64} {
  func.func @drrnn_kernel(%arg0: i32, %arg1: memref<256x128xf32, #tpu.memory_space<vmem>>, %arg2: memref<128x128xf32, #tpu.memory_space<vmem>>, %arg3: memref<1x128xf32, #tpu.memory_space<vmem>>, %arg4: memref<2x128x128xf32, #tpu.memory_space<vmem>>, %arg5: memref<2x1x128xf32, #tpu.memory_space<vmem>>, %arg6: memref<2x128x128xf32, #tpu.memory_space<vmem>>, %arg7: memref<2x1x128xf32, #tpu.memory_space<vmem>>, %arg8: memref<128x128xf32, #tpu.memory_space<vmem>>, %arg9: memref<1x128xf32, #tpu.memory_space<vmem>>, %arg10: memref<256x128xf32, #tpu.memory_space<vmem>>) attributes {dimension_semantics = [#tpu.dimension_semantics<parallel>], iteration_bounds = array<i64: 2>, scalar_prefetch = 0 : i64, scratch_operands = 0 : i64, tpu.core_type = #tpu.core_type<tc>, window_params = [{transform_indices = @transform_0, window_bounds = array<i64: 256, 128>}, {pipeline_mode = #tpu.pipeline_mode<synchronous>, transform_indices = @transform_1, window_bounds = array<i64: 128, 128>}, {pipeline_mode = #tpu.pipeline_mode<synchronous>, transform_indices = @transform_2, window_bounds = array<i64: 1, 128>}, {pipeline_mode = #tpu.pipeline_mode<synchronous>, transform_indices = @transform_3, window_bounds = array<i64: 2, 128, 128>}, {pipeline_mode = #tpu.pipeline_mode<synchronous>, transform_indices = @transform_4, window_bounds = array<i64: 2, 1, 128>}, {pipeline_mode = #tpu.pipeline_mode<synchronous>, transform_indices = @transform_5, window_bounds = array<i64: 2, 128, 128>}, {pipeline_mode = #tpu.pipeline_mode<synchronous>, transform_indices = @transform_6, window_bounds = array<i64: 2, 1, 128>}, {pipeline_mode = #tpu.pipeline_mode<synchronous>, transform_indices = @transform_7, window_bounds = array<i64: 128, 128>}, {pipeline_mode = #tpu.pipeline_mode<synchronous>, transform_indices = @transform_8, window_bounds = array<i64: 1, 128>}, {transform_indices = @transform_9, window_bounds = array<i64: 256, 128>}]} {
    %c0 = arith.constant 0 : index
    %c0_0 = arith.constant 0 : index
    %0 = vector.load %arg1[%c0, %c0_0] : memref<256x128xf32, #tpu.memory_space<vmem>>, vector<256x128xf32>
    %1 = vector.extract_strided_slice %0 {offsets = [0, 0], sizes = [256, 1], strides = [1, 1]} : vector<256x128xf32> to vector<256x1xf32>
    %2 = vector.extract_strided_slice %0 {offsets = [0, 1], sizes = [256, 1], strides = [1, 1]} : vector<256x128xf32> to vector<256x1xf32>
    %3 = vector.extract_strided_slice %0 {offsets = [0, 2], sizes = [256, 1], strides = [1, 1]} : vector<256x128xf32> to vector<256x1xf32>
    %4 = arith.mulf %1, %2 : vector<256x1xf32>
    %5 = arith.mulf %4, %3 : vector<256x1xf32>
    %cst = arith.constant 1.000000e+00 : f32
    %6 = vector.broadcast %cst : f32 to vector<256x1xf32>
    %7 = arith.subf %6, %1 : vector<256x1xf32>
    %8 = arith.mulf %5, %7 : vector<256x1xf32>
    %cst_1 = arith.constant 1.000000e+00 : f32
    %9 = vector.broadcast %cst_1 : f32 to vector<256x1xf32>
    %10 = arith.subf %9, %2 : vector<256x1xf32>
    %11 = arith.mulf %8, %10 : vector<256x1xf32>
    %c0_2 = arith.constant 0 : index
    %c0_3 = arith.constant 0 : index
    %12 = vector.load %arg2[%c0_2, %c0_3] : memref<128x128xf32, #tpu.memory_space<vmem>>, vector<128x128xf32>
    %cst_4 = arith.constant dense<0.000000e+00> : vector<256x128xf32>
    %13 = tpu.matmul %0, %12, %cst_4 {dimension_numbers = #tpu.dot_dimension_numbers<[1], [0], [0], [1], [0, 0, 1, 1], [], []>} : vector<256x128xf32>, vector<128x128xf32>, vector<256x128xf32> -> vector<256x128xf32>
    %c0_5 = arith.constant 0 : index
    %c0_6 = arith.constant 0 : index
    %14 = vector.load %arg3[%c0_5, %c0_6] : memref<1x128xf32, #tpu.memory_space<vmem>>, vector<1x128xf32>
    %15 = vector.broadcast %14 : vector<1x128xf32> to vector<256x128xf32>
    %16 = arith.addf %13, %15 : vector<256x128xf32>
    %c0_7 = arith.constant 0 : index
    %c0_8 = arith.constant 0 : index
    %c0_9 = arith.constant 0 : index
    %17 = vector.load %arg4[%c0_7, %c0_8, %c0_9] : memref<2x128x128xf32, #tpu.memory_space<vmem>>, vector<1x128x128xf32>
    %18 = vector.shape_cast %17 : vector<1x128x128xf32> to vector<128x128xf32>
    %cst_10 = arith.constant dense<0.000000e+00> : vector<256x128xf32>
    %19 = tpu.matmul %16, %18, %cst_10 {dimension_numbers = #tpu.dot_dimension_numbers<[1], [0], [0], [1], [0, 0, 1, 1], [], []>} : vector<256x128xf32>, vector<128x128xf32>, vector<256x128xf32> -> vector<256x128xf32>
    %c0_11 = arith.constant 0 : index
    %c0_12 = arith.constant 0 : index
    %c0_13 = arith.constant 0 : index
    %20 = vector.load %arg5[%c0_11, %c0_12, %c0_13] : memref<2x1x128xf32, #tpu.memory_space<vmem>>, vector<1x1x128xf32>
    %21 = vector.shape_cast %20 : vector<1x1x128xf32> to vector<1x128xf32>
    %22 = vector.broadcast %21 : vector<1x128xf32> to vector<256x128xf32>
    %23 = arith.addf %19, %22 : vector<256x128xf32>
    %24 = math.tanh %23 : vector<256x128xf32>
    %c0_14 = arith.constant 0 : index
    %c0_15 = arith.constant 0 : index
    %c0_16 = arith.constant 0 : index
    %25 = vector.load %arg6[%c0_14, %c0_15, %c0_16] : memref<2x128x128xf32, #tpu.memory_space<vmem>>, vector<1x128x128xf32>
    %26 = vector.shape_cast %25 : vector<1x128x128xf32> to vector<128x128xf32>
    %cst_17 = arith.constant dense<0.000000e+00> : vector<256x128xf32>
    %27 = tpu.matmul %24, %26, %cst_17 {dimension_numbers = #tpu.dot_dimension_numbers<[1], [0], [0], [1], [0, 0, 1, 1], [], []>} : vector<256x128xf32>, vector<128x128xf32>, vector<256x128xf32> -> vector<256x128xf32>
    %c0_18 = arith.constant 0 : index
    %c0_19 = arith.constant 0 : index
    %c0_20 = arith.constant 0 : index
    %28 = vector.load %arg7[%c0_18, %c0_19, %c0_20] : memref<2x1x128xf32, #tpu.memory_space<vmem>>, vector<1x1x128xf32>
    %29 = vector.shape_cast %28 : vector<1x1x128xf32> to vector<1x128xf32>
    %30 = vector.broadcast %29 : vector<1x128xf32> to vector<256x128xf32>
    %31 = arith.addf %27, %30 : vector<256x128xf32>
    %32 = math.tanh %31 : vector<256x128xf32>
    %33 = arith.addf %32, %16 : vector<256x128xf32>
    %c1 = arith.constant 1 : index
    %c0_21 = arith.constant 0 : index
    %c0_22 = arith.constant 0 : index
    %34 = vector.load %arg4[%c1, %c0_21, %c0_22] : memref<2x128x128xf32, #tpu.memory_space<vmem>>, vector<1x128x128xf32>
    %35 = vector.shape_cast %34 : vector<1x128x128xf32> to vector<128x128xf32>
    %cst_23 = arith.constant dense<0.000000e+00> : vector<256x128xf32>
    %36 = tpu.matmul %33, %35, %cst_23 {dimension_numbers = #tpu.dot_dimension_numbers<[1], [0], [0], [1], [0, 0, 1, 1], [], []>} : vector<256x128xf32>, vector<128x128xf32>, vector<256x128xf32> -> vector<256x128xf32>
    %c1_24 = arith.constant 1 : index
    %c0_25 = arith.constant 0 : index
    %c0_26 = arith.constant 0 : index
    %37 = vector.load %arg5[%c1_24, %c0_25, %c0_26] : memref<2x1x128xf32, #tpu.memory_space<vmem>>, vector<1x1x128xf32>
    %38 = vector.shape_cast %37 : vector<1x1x128xf32> to vector<1x128xf32>
    %39 = vector.broadcast %38 : vector<1x128xf32> to vector<256x128xf32>
    %40 = arith.addf %36, %39 : vector<256x128xf32>
    %41 = math.tanh %40 : vector<256x128xf32>
    %c1_27 = arith.constant 1 : index
    %c0_28 = arith.constant 0 : index
    %c0_29 = arith.constant 0 : index
    %42 = vector.load %arg6[%c1_27, %c0_28, %c0_29] : memref<2x128x128xf32, #tpu.memory_space<vmem>>, vector<1x128x128xf32>
    %43 = vector.shape_cast %42 : vector<1x128x128xf32> to vector<128x128xf32>
    %cst_30 = arith.constant dense<0.000000e+00> : vector<256x128xf32>
    %44 = tpu.matmul %41, %43, %cst_30 {dimension_numbers = #tpu.dot_dimension_numbers<[1], [0], [0], [1], [0, 0, 1, 1], [], []>} : vector<256x128xf32>, vector<128x128xf32>, vector<256x128xf32> -> vector<256x128xf32>
    %c1_31 = arith.constant 1 : index
    %c0_32 = arith.constant 0 : index
    %c0_33 = arith.constant 0 : index
    %45 = vector.load %arg7[%c1_31, %c0_32, %c0_33] : memref<2x1x128xf32, #tpu.memory_space<vmem>>, vector<1x1x128xf32>
    %46 = vector.shape_cast %45 : vector<1x1x128xf32> to vector<1x128xf32>
    %47 = vector.broadcast %46 : vector<1x128xf32> to vector<256x128xf32>
    %48 = arith.addf %44, %47 : vector<256x128xf32>
    %49 = math.tanh %48 : vector<256x128xf32>
    %50 = arith.addf %49, %33 : vector<256x128xf32>
    %c0_34 = arith.constant 0 : index
    %c0_35 = arith.constant 0 : index
    %51 = vector.load %arg8[%c0_34, %c0_35] : memref<128x128xf32, #tpu.memory_space<vmem>>, vector<128x128xf32>
    %cst_36 = arith.constant dense<0.000000e+00> : vector<256x128xf32>
    %52 = tpu.matmul %50, %51, %cst_36 {dimension_numbers = #tpu.dot_dimension_numbers<[1], [0], [0], [1], [0, 0, 1, 1], [], []>} : vector<256x128xf32>, vector<128x128xf32>, vector<256x128xf32> -> vector<256x128xf32>
    %c0_37 = arith.constant 0 : index
    %c0_38 = arith.constant 0 : index
    %53 = vector.load %arg9[%c0_37, %c0_38] : memref<1x128xf32, #tpu.memory_space<vmem>>, vector<1x128xf32>
    %54 = vector.broadcast %53 : vector<1x128xf32> to vector<256x128xf32>
    %55 = arith.addf %52, %54 : vector<256x128xf32>
    %56 = vector.broadcast %11 : vector<256x1xf32> to vector<256x128xf32>
    %57 = arith.mulf %55, %56 : vector<256x128xf32>
    %c0_39 = arith.constant 0 : index
    %c0_40 = arith.constant 0 : index
    %58 = vector.load %arg10[%c0_39, %c0_40] : memref<256x128xf32, #tpu.memory_space<vmem>>, vector<256x128xf32>
    tpu.vector_store %arg10[%c0_39, %c0_40], %57 {strides = array<i32>} : memref<256x128xf32, #tpu.memory_space<vmem>>, vector<256x128xf32>,
    return
  }
  func.func @transform_0(%arg0: i32) -> (i32, i32) {
    %c0_i32 = arith.constant 0 : i32
    %c0_i32_0 = arith.constant 0 : i32
    return %arg0, %c0_i32 : i32, i32
  }
  func.func @transform_1(%arg0: i32) -> (i32, i32) {
    %c0_i32 = arith.constant 0 : i32
    %c0_i32_0 = arith.constant 0 : i32
    %c0_i32_1 = arith.constant 0 : i32
    return %c0_i32, %c0_i32_0 : i32, i32
  }
  func.func @transform_2(%arg0: i32) -> (i32, i32) {
    %c0_i32 = arith.constant 0 : i32
    %c0_i32_0 = arith.constant 0 : i32
    %c0_i32_1 = arith.constant 0 : i32
    return %c0_i32, %c0_i32_0 : i32, i32
  }
  func.func @transform_3(%arg0: i32) -> (i32, i32, i32) {
    %c0_i32 = arith.constant 0 : i32
    %c0_i32_0 = arith.constant 0 : i32
    %c0_i32_1 = arith.constant 0 : i32
    %c0_i32_2 = arith.constant 0 : i32
    return %c0_i32, %c0_i32_0, %c0_i32_1 : i32, i32, i32
  }
  func.func @transform_4(%arg0: i32) -> (i32, i32, i32) {
    %c0_i32 = arith.constant 0 : i32
    %c0_i32_0 = arith.constant 0 : i32
    %c0_i32_1 = arith.constant 0 : i32
    %c0_i32_2 = arith.constant 0 : i32
    return %c0_i32, %c0_i32_0, %c0_i32_1 : i32, i32, i32
  }
  func.func @transform_5(%arg0: i32) -> (i32, i32, i32) {
    %c0_i32 = arith.constant 0 : i32
    %c0_i32_0 = arith.constant 0 : i32
    %c0_i32_1 = arith.constant 0 : i32
    %c0_i32_2 = arith.constant 0 : i32
    return %c0_i32, %c0_i32_0, %c0_i32_1 : i32, i32, i32
  }
  func.func @transform_6(%arg0: i32) -> (i32, i32, i32) {
    %c0_i32 = arith.constant 0 : i32
    %c0_i32_0 = arith.constant 0 : i32
    %c0_i32_1 = arith.constant 0 : i32
    %c0_i32_2 = arith.constant 0 : i32
    return %c0_i32, %c0_i32_0, %c0_i32_1 : i32, i32, i32
  }
  func.func @transform_7(%arg0: i32) -> (i32, i32) {
    %c0_i32 = arith.constant 0 : i32
    %c0_i32_0 = arith.constant 0 : i32
    %c0_i32_1 = arith.constant 0 : i32
    return %c0_i32, %c0_i32_0 : i32, i32
  }
  func.func @transform_8(%arg0: i32) -> (i32, i32) {
    %c0_i32 = arith.constant 0 : i32
    %c0_i32_0 = arith.constant 0 : i32
    %c0_i32_1 = arith.constant 0 : i32
    return %c0_i32, %c0_i32_0 : i32, i32
  }
  func.func @transform_9(%arg0: i32) -> (i32, i32) {
    %c0_i32 = arith.constant 0 : i32
    %c0_i32_0 = arith.constant 0 : i32
    return %arg0, %c0_i32 : i32, i32
  }
}

</mosaic_0001>

<llo_original>
// kernel: drrnn_forward.1
$region0: #{drrnn_forward.1}
  #allocation0 [shape = 'u32[]', space=smem, size = 0x4, offset = 0x4, fixed_abs, tag = 'smem constant byte address 0x4 - core index']
  #allocation1 [shape = 'u32[144,128]{1,0:T(1,128)}', space=vmem, size = 0x12000, scoped, tag = 'internal scratch']
  %s0 = inlined_call_operand.vmem [shape: f32[512,128], index: 0, kind: input, shape index: {}, may-alias: {0,9}]
  %s1 = inlined_call_operand.vmem [shape: f32[128,128], index: 1, kind: input, shape index: {}]
  %s2 = inlined_call_operand.vmem [shape: f32[1,128], index: 2, kind: input, shape index: {}]
  %s3 = inlined_call_operand.vmem [shape: f32[2,128,128], index: 3, kind: input, shape index: {}]
  %s4 = inlined_call_operand.vmem [shape: f32[2,1,128], index: 4, kind: input, shape index: {}]
  %s5 = inlined_call_operand.vmem [shape: f32[2,128,128], index: 5, kind: input, shape index: {}]
  %s6 = inlined_call_operand.vmem [shape: f32[2,1,128], index: 6, kind: input, shape index: {}]
  %s7 = inlined_call_operand.vmem [shape: f32[128,128], index: 7, kind: input, shape index: {}]
  %s8 = inlined_call_operand.vmem [shape: f32[1,128], index: 8, kind: input, shape index: {}]
  %s9 = inlined_call_operand.vmem [shape: f32[512,128], index: 9, kind: output, shape index: {}, may-alias: {0,9}]
  %s10 = sld [smem:[#allocation0]]
  $region69: #{drrnn_forward.1} parent=0
    _
  %s12 = ssub.s32 1, %s10
  %s13 = scalar_select 0, %s12, %s10
  loop: start=0, step=1, limit=4
  $region2: #{drrnn_forward.1} parent=0 // loop_pre_header
    _
  $region3: #{drrnn_forward.1} parent=0 // loop_header
    %s15 = sphi 0, %s19
    %p16 = scmp.ge.s32.totalorder %s15, 4
    %s25 = sphi 0, %s27
    %s28 = sphi 0, %s25
    %s29 = sphi 0, %s28
    %s45 = sphi 0, %s29
    %s49 = sphi 0, %s49
    %s51 = sphi 0, %s49
    %s52 = sphi 0, %s51
    %s66 = sphi 0, %s52
    %s70 = sphi 0, %s70
    %s72 = sphi 0, %s70
    %s73 = sphi 0, %s72
    %s87 = sphi 0, %s73
    %s91 = sphi 0, %s91
    %s93 = sphi 0, %s91
    %s94 = sphi 0, %s93
    %s108 = sphi 0, %s94
    %s112 = sphi 0, %s112
    %s114 = sphi 0, %s112
    %s115 = sphi 0, %s114
    %s129 = sphi 0, %s115
    %s133 = sphi 0, %s133
    %s135 = sphi 0, %s133
    %s136 = sphi 0, %s135
    %s150 = sphi 0, %s136
    %s154 = sphi 0, %s154
    %s156 = sphi 0, %s154
    %s157 = sphi 0, %s156
    %s171 = sphi 0, %s157
    %s175 = sphi 0, %s175
    %s177 = sphi 0, %s175
    %s178 = sphi 0, %s177
    %s192 = sphi 0, %s178
    %s196 = sphi 0, %s196
    %s198 = sphi 0, %s196
    %s199 = sphi 0, %s198
    %s213 = sphi 0, %s199
    %s219 = sphi 0, %s221
    %s222 = sphi 0, %s219
    %s223 = sphi 0, %s222
    %s239 = sphi 0, %s223
  $region4: #{drrnn_forward.1} parent=0 // loop_header_branch
    %18 = sbr.rel (%p16) target = $region8
  $region5: #{drrnn_forward.1} parent=0 // loop_body
    %s20 = ssub.s32 %s15, 1
    %s21 = ssub.s32 %s15, 2
    %s22 = sadd.s32 %s15, 1
    %s23 = ssub.s32 %s15, %s22
    %p24 = scmp.eq.s32.totalorder %s23, 0
    %s26 = sadd.s32 %s25, 1
    %s27 = scalar_select %p24, %s25, %s26
    %p30 = pneg %p24
    %p31 = scmp.eq.s32.totalorder %s15, 1
    %p32 = por %p30, %p31
    %p33 = scmp.ne.s32.totalorder %s25, %s28
    %p34 = scmp.eq.s32.totalorder %s15, 0
    %p35 = por %p33, %p34
    %p36 = scmp.ne.s32.totalorder %s25, %s28
    %p37 = scmp.eq.s32.totalorder %s20, 1
    %p38 = por %p36, %p37
    %p39 = scmp.ne.s32.totalorder %s28, %s29
    %p40 = scmp.eq.s32.totalorder %s20, 0
    %p41 = por %p39, %p40
    %p42 = scmp.ne.s32.totalorder %s28, %s29
    %p43 = scmp.eq.s32.totalorder %s21, 1
    %p44 = por %p42, %p43
    %p46 = scmp.ne.s32.totalorder %s29, %s45
    %p47 = scmp.eq.s32.totalorder %s21, 0
    %p48 = por %p46, %p47
    %s50 = sadd.s32 %s49, 1
    %p53 = scmp.eq.s32.totalorder %s15, 1
    %p54 = scmp.ne.s32.totalorder %s49, %s51
    %p55 = scmp.eq.s32.totalorder %s15, 0
    %p56 = por %p54, %p55
    %p57 = scmp.ne.s32.totalorder %s49, %s51
    %p58 = scmp.eq.s32.totalorder %s20, 1
    %p59 = por %p57, %p58
    %p60 = scmp.ne.s32.totalorder %s51, %s52
    %p61 = scmp.eq.s32.totalorder %s20, 0
    %p62 = por %p60, %p61
    %p63 = scmp.ne.s32.totalorder %s51, %s52
    %p64 = scmp.eq.s32.totalorder %s21, 1
    %p65 = por %p63, %p64
    %p67 = scmp.ne.s32.totalorder %s52, %s66
    %p68 = scmp.eq.s32.totalorder %s21, 0
    %p69 = por %p67, %p68
    %s71 = sadd.s32 %s70, 1
    %p74 = scmp.eq.s32.totalorder %s15, 1
    %p75 = scmp.ne.s32.totalorder %s70, %s72
    %p76 = scmp.eq.s32.totalorder %s15, 0
    %p77 = por %p75, %p76
    %p78 = scmp.ne.s32.totalorder %s70, %s72
    %p79 = scmp.eq.s32.totalorder %s20, 1
    %p80 = por %p78, %p79
    %p81 = scmp.ne.s32.totalorder %s72, %s73
    %p82 = scmp.eq.s32.totalorder %s20, 0
    %p83 = por %p81, %p82
    %p84 = scmp.ne.s32.totalorder %s72, %s73
    %p85 = scmp.eq.s32.totalorder %s21, 1
    %p86 = por %p84, %p85
    %p88 = scmp.ne.s32.totalorder %s73, %s87
    %p89 = scmp.eq.s32.totalorder %s21, 0
    %p90 = por %p88, %p89
    %s92 = sadd.s32 %s91, 1
    %p95 = scmp.eq.s32.totalorder %s15, 1
    %p96 = scmp.ne.s32.totalorder %s91, %s93
    %p97 = scmp.eq.s32.totalorder %s15, 0
    %p98 = por %p96, %p97
    %p99 = scmp.ne.s32.totalorder %s91, %s93
    %p100 = scmp.eq.s32.totalorder %s20, 1
    %p101 = por %p99, %p100
    %p102 = scmp.ne.s32.totalorder %s93, %s94
    %p103 = scmp.eq.s32.totalorder %s20, 0
    %p104 = por %p102, %p103
    %p105 = scmp.ne.s32.totalorder %s93, %s94
    %p106 = scmp.eq.s32.totalorder %s21, 1
    %p107 = por %p105, %p106
    %p109 = scmp.ne.s32.totalorder %s94, %s108
    %p110 = scmp.eq.s32.totalorder %s21, 0
    %p111 = por %p109, %p110
    %s113 = sadd.s32 %s112, 1
    %p116 = scmp.eq.s32.totalorder %s15, 1
    %p117 = scmp.ne.s32.totalorder %s112, %s114
    %p118 = scmp.eq.s32.totalorder %s15, 0
    %p119 = por %p117, %p118
    %p120 = scmp.ne.s32.totalorder %s112, %s114
    %p121 = scmp.eq.s32.totalorder %s20, 1
    %p122 = por %p120, %p121
    %p123 = scmp.ne.s32.totalorder %s114, %s115
    %p124 = scmp.eq.s32.totalorder %s20, 0
    %p125 = por %p123, %p124
    %p126 = scmp.ne.s32.totalorder %s114, %s115
    %p127 = scmp.eq.s32.totalorder %s21, 1
    %p128 = por %p126, %p127
    %p130 = scmp.ne.s32.totalorder %s115, %s129
    %p131 = scmp.eq.s32.totalorder %s21, 0
    %p132 = por %p130, %p131
    %s134 = sadd.s32 %s133, 1
    %p137 = scmp.eq.s32.totalorder %s15, 1
    %p138 = scmp.ne.s32.totalorder %s133, %s135
    %p139 = scmp.eq.s32.totalorder %s15, 0
    %p140 = por %p138, %p139
    %p141 = scmp.ne.s32.totalorder %s133, %s135
    %p142 = scmp.eq.s32.totalorder %s20, 1
    %p143 = por %p141, %p142
    %p144 = scmp.ne.s32.totalorder %s135, %s136
    %p145 = scmp.eq.s32.totalorder %s20, 0
    %p146 = por %p144, %p145
    %p147 = scmp.ne.s32.totalorder %s135, %s136
    %p148 = scmp.eq.s32.totalorder %s21, 1
    %p149 = por %p147, %p148
    %p151 = scmp.ne.s32.totalorder %s136, %s150
    %p152 = scmp.eq.s32.totalorder %s21, 0
    %p153 = por %p151, %p152
    %s155 = sadd.s32 %s154, 1
    %p158 = scmp.eq.s32.totalorder %s15, 1
    %p159 = scmp.ne.s32.totalorder %s154, %s156
    %p160 = scmp.eq.s32.totalorder %s15, 0
    %p161 = por %p159, %p160
    %p162 = scmp.ne.s32.totalorder %s154, %s156
    %p163 = scmp.eq.s32.totalorder %s20, 1
    %p164 = por %p162, %p163
    %p165 = scmp.ne.s32.totalorder %s156, %s157
    %p166 = scmp.eq.s32.totalorder %s20, 0
    %p167 = por %p165, %p166
    %p168 = scmp.ne.s32.totalorder %s156, %s157
    %p169 = scmp.eq.s32.totalorder %s21, 1
    %p170 = por %p168, %p169
    %p172 = scmp.ne.s32.totalorder %s157, %s171
    %p173 = scmp.eq.s32.totalorder %s21, 0
    %p174 = por %p172, %p173
    %s176 = sadd.s32 %s175, 1
    %p179 = scmp.eq.s32.totalorder %s15, 1
    %p180 = scmp.ne.s32.totalorder %s175, %s177
    %p181 = scmp.eq.s32.totalorder %s15, 0
    %p182 = por %p180, %p181
    %p183 = scmp.ne.s32.totalorder %s175, %s177
    %p184 = scmp.eq.s32.totalorder %s20, 1
    %p185 = por %p183, %p184
    %p186 = scmp.ne.s32.totalorder %s177, %s178
    %p187 = scmp.eq.s32.totalorder %s20, 0
    %p188 = por %p186, %p187
    %p189 = scmp.ne.s32.totalorder %s177, %s178
    %p190 = scmp.eq.s32.totalorder %s21, 1
    %p191 = por %p189, %p190
    %p193 = scmp.ne.s32.totalorder %s178, %s192
    %p194 = scmp.eq.s32.totalorder %s21, 0
    %p195 = por %p193, %p194
    %s197 = sadd.s32 %s196, 1
    %p200 = scmp.eq.s32.totalorder %s15, 1
    %p201 = scmp.ne.s32.totalorder %s196, %s198
    %p202 = scmp.eq.s32.totalorder %s15, 0
    %p203 = por %p201, %p202
    %p204 = scmp.ne.s32.totalorder %s196, %s198
    %p205 = scmp.eq.s32.totalorder %s20, 1
    %p206 = por %p204, %p205
    %p207 = scmp.ne.s32.totalorder %s198, %s199
    %p208 = scmp.eq.s32.totalorder %s20, 0
    %p209 = por %p207, %p208
    %p210 = scmp.ne.s32.totalorder %s198, %s199
    %p211 = scmp.eq.s32.totalorder %s21, 1
    %p212 = por %p210, %p211
    %p214 = scmp.ne.s32.totalorder %s199, %s213
    %p215 = scmp.eq.s32.totalorder %s21, 0
    %p216 = por %p214, %p215
    %s217 = ssub.s32 %s15, %s22
    %p218 = scmp.eq.s32.totalorder %s217, 0
    %s220 = sadd.s32 %s219, 1
    %s221 = scalar_select %p218, %s219, %s220
    %p224 = pneg %p218
    %p225 = scmp.eq.s32.totalorder %s15, 1
    %p226 = por %p224, %p225
    %p227 = scmp.ne.s32.totalorder %s219, %s222
    %p228 = scmp.eq.s32.totalorder %s15, 0
    %p229 = por %p227, %p228
    %p230 = scmp.ne.s32.totalorder %s219, %s222
    %p231 = scmp.eq.s32.totalorder %s20, 1
    %p232 = por %p230, %p231
    %p233 = scmp.ne.s32.totalorder %s222, %s223
    %p234 = scmp.eq.s32.totalorder %s20, 0
    %p235 = por %p233, %p234
    %p236 = scmp.ne.s32.totalorder %s222, %s223
    %p237 = scmp.eq.s32.totalorder %s21, 1
    %p238 = por %p236, %p237
    %p240 = scmp.ne.s32.totalorder %s223, %s239
    %p241 = scmp.eq.s32.totalorder %s21, 0
    %p242 = por %p240, %p241
    %p243 = scmp.le.s32.totalorder 1, %s15
    %p244 = scmp.lt.s32.totalorder %s15, 3
    %p245 = pnand %p243, %p244
    %p246 = pneg %p245
    // Predicated region
    $region9: #{drrnn_forward.1} parent=5 // pred_check
      _
    $region10: #{drrnn_forward.1} parent=5 // pred_check_branch
      %248 = sbr.rel (%p245) target = $region12
    $region11: #{drrnn_forward.1} parent=5 // pred_region
      %s249 = ssub.s32 %s15, 1
      // Predicated region
      $region13: #{drrnn_forward.1} parent=11 // pred_check
        %p250 = pneg %p62
      $region14: #{drrnn_forward.1} parent=11 // pred_check_branch
        %252 = sbr.rel (%p250) target = $region16
      $region15: #{drrnn_forward.1} parent=11 // pred_region
        _
      $region16: #{drrnn_forward.1} parent=11 // pred_fallthru
        _
      // Predicated region
      $region17: #{drrnn_forward.1} parent=11 // pred_check
        %p253 = pneg %p83
      $region18: #{drrnn_forward.1} parent=11 // pred_check_branch
        %255 = sbr.rel (%p253) target = $region20
      $region19: #{drrnn_forward.1} parent=11 // pred_region
        _
      $region20: #{drrnn_forward.1} parent=11 // pred_fallthru
        _
      // Predicated region
      $region21: #{drrnn_forward.1} parent=11 // pred_check
        %p256 = pneg %p104
      $region22: #{drrnn_forward.1} parent=11 // pred_check_branch
        %258 = sbr.rel (%p256) target = $region24
      $region23: #{drrnn_forward.1} parent=11 // pred_region
        _
      $region24: #{drrnn_forward.1} parent=11 // pred_fallthru
        _
      // Predicated region
      $region25: #{drrnn_forward.1} parent=11 // pred_check
        %p259 = pneg %p125
      $region26: #{drrnn_forward.1} parent=11 // pred_check_branch
        %261 = sbr.rel (%p259) target = $region28
      $region27: #{drrnn_forward.1} parent=11 // pred_region
        _
      $region28: #{drrnn_forward.1} parent=11 // pred_fallthru
        _
      // Predicated region
      $region29: #{drrnn_forward.1} parent=11 // pred_check
        %p262 = pneg %p146
      $region30: #{drrnn_forward.1} parent=11 // pred_check_branch
        %264 = sbr.rel (%p262) target = $region32
      $region31: #{drrnn_forward.1} parent=11 // pred_region
        _
      $region32: #{drrnn_forward.1} parent=11 // pred_fallthru
        _
      // Predicated region
      $region33: #{drrnn_forward.1} parent=11 // pred_check
        %p265 = pneg %p167
      $region34: #{drrnn_forward.1} parent=11 // pred_check_branch
        %267 = sbr.rel (%p265) target = $region36
      $region35: #{drrnn_forward.1} parent=11 // pred_region
        _
      $region36: #{drrnn_forward.1} parent=11 // pred_fallthru
        _
      // Predicated region
      $region37: #{drrnn_forward.1} parent=11 // pred_check
        %p268 = pneg %p188
      $region38: #{drrnn_forward.1} parent=11 // pred_check_branch
        %270 = sbr.rel (%p268) target = $region40
      $region39: #{drrnn_forward.1} parent=11 // pred_region
        _
      $region40: #{drrnn_forward.1} parent=11 // pred_fallthru
        _
      // Predicated region
      $region41: #{drrnn_forward.1} parent=11 // pred_check
        %p271 = pneg %p209
      $region42: #{drrnn_forward.1} parent=11 // pred_check_branch
        %273 = sbr.rel (%p271) target = $region44
      $region43: #{drrnn_forward.1} parent=11 // pred_region
        _
      $region44: #{drrnn_forward.1} parent=11 // pred_fallthru
        _
    $region12: #{drrnn_forward.1} parent=5 // pred_fallthru
      _
    %p274 = scmp.lt.s32.totalorder %s15, 2
    // Predicated region
    $region45: #{drrnn_forward.1} parent=5 // pred_check
      %p275 = pneg %p274
    $region46: #{drrnn_forward.1} parent=5 // pred_check_branch
      %277 = sbr.rel (%p275) target = $region48
    $region47: #{drrnn_forward.1} parent=5 // pred_region
      // Predicated region
      $region49: #{drrnn_forward.1} parent=47 // pred_check
        %p278 = pneg %p35
      $region50: #{drrnn_forward.1} parent=47 // pred_check_branch
        %280 = sbr.rel (%p278) target = $region52
      $region51: #{drrnn_forward.1} parent=47 // pred_region
        %s281 = smul.u32 32, %s15
        %p282 = scmp.lt.s32.totalorder %s281, 63
        %s283 = scalar_select %p282, %s281, 63
        %s284 = smul.addr %s283, 8
        %s285 = scalar_lea.vmem %s0, %s284
        %s286 = smul.u32 32, %s15
      $region52: #{drrnn_forward.1} parent=47 // pred_fallthru
        _
    $region48: #{drrnn_forward.1} parent=5 // pred_fallthru
      _
    %p287 = scmp.le.s32.totalorder 1, %s15
    %p288 = scmp.lt.s32.totalorder %s15, 3
    %p289 = pnand %p287, %p288
    %p290 = pneg %p289
    // Predicated region
    $region53: #{drrnn_forward.1} parent=5 // pred_check
      _
    $region54: #{drrnn_forward.1} parent=5 // pred_check_branch
      %292 = sbr.rel (%p289) target = $region56
    $region55: #{drrnn_forward.1} parent=5 // pred_region
      %s293 = ssub.s32 %s15, 1
      %s294 = smul.u32 32, %s20
      %p295 = scmp.lt.s32.totalorder %s294, 63
      %s296 = scalar_select %p295, %s294, 63
      %s297 = smul.addr %s296, 8
      %s298 = scalar_lea.vmem %s0, %s297
      %p299 = pneg %p41
      %p300 = pneg %p38
      %p301 = pneg %p62
      %p302 = pneg %p59
      %p303 = pneg %p83
      %p304 = pneg %p80
      %p305 = pneg %p104
      %p306 = pneg %p101
      %p307 = pneg %p125
      %p308 = pneg %p122
      %p309 = pneg %p146
      %p310 = pneg %p143
      %p311 = pneg %p167
      %p312 = pneg %p164
      %p313 = pneg %p188
      %p314 = pneg %p185
      %p315 = pneg %p209
      %p316 = pneg %p206
      %p317 = pneg %p235
      %p318 = pneg %p232
      %s319 = smul.u32 32, %s20
      %p320 = scmp.lt.s32.totalorder %s319, 63
      %s321 = scalar_select %p320, %s319, 63
      %s322 = smul.addr %s321, 8
      %s323 = scalar_lea.vmem %s9, %s322
      %s324 = smul.u32 32, %s20
      %p325 = scmp.lt.s32.totalorder %s324, 63
      %s326 = scalar_select %p325, %s324, 63
      %s327 = smul.addr %s326, 8
      %s328 = scalar_lea.vmem %s0, %s327
      %s329 = smul.u32 32, %s20
      %s330 = smul.u32 32, %s20
      %p331 = scmp.lt.s32.totalorder %s330, 63
      %s332 = scalar_select %p331, %s330, 63
      %s333 = smul.addr %s332, 8
      %s334 = scalar_lea.vmem %s9, %s333
      %s335 = smul.u32 32, %s20
      %v336 = vld [vmem:[%s328] sm:$0xff]
      %v337 = vld [vmem:[%s328 + $0x8] sm:$0xff]
      %v338 = vld [vmem:[%s328 + $0x10] sm:$0xff]
      %v339 = vld [vmem:[%s328 + $0x18] sm:$0xff]
      %v340 = vld [vmem:[%s328 + $0x20] sm:$0xff]
      %v341 = vld [vmem:[%s328 + $0x28] sm:$0xff]
      %v342 = vld [vmem:[%s328 + $0x30] sm:$0xff]
      %v343 = vld [vmem:[%s328 + $0x38] sm:$0xff]
      %v344 = vld [vmem:[%s328 + $0x40] sm:$0xff]
      %v345 = vld [vmem:[%s328 + $0x48] sm:$0xff]
      %v346 = vld [vmem:[%s328 + $0x50] sm:$0xff]
      %v347 = vld [vmem:[%s328 + $0x58] sm:$0xff]
      %v348 = vld [vmem:[%s328 + $0x60] sm:$0xff]
      %v349 = vld [vmem:[%s328 + $0x68] sm:$0xff]
      %v350 = vld [vmem:[%s328 + $0x70] sm:$0xff]
      %v351 = vld [vmem:[%s328 + $0x78] sm:$0xff]
      %v352 = vld [vmem:[%s328 + $0x80] sm:$0xff]
      %v353 = vld [vmem:[%s328 + $0x88] sm:$0xff]
      %v354 = vld [vmem:[%s328 + $0x90] sm:$0xff]
      %v355 = vld [vmem:[%s328 + $0x98] sm:$0xff]
      %v356 = vld [vmem:[%s328 + $0xa0] sm:$0xff]
      %v357 = vld [vmem:[%s328 + $0xa8] sm:$0xff]
      %v358 = vld [vmem:[%s328 + $0xb0] sm:$0xff]
      %v359 = vld [vmem:[%s328 + $0xb8] sm:$0xff]
      %v360 = vld [vmem:[%s328 + $0xc0] sm:$0xff]
      %v361 = vld [vmem:[%s328 + $0xc8] sm:$0xff]
      %v362 = vld [vmem:[%s328 + $0xd0] sm:$0xff]
      %v363 = vld [vmem:[%s328 + $0xd8] sm:$0xff]
      %v364 = vld [vmem:[%s328 + $0xe0] sm:$0xff]
      %v365 = vld [vmem:[%s328 + $0xe8] sm:$0xff]
      %v366 = vld [vmem:[%s328 + $0xf0] sm:$0xff]
      %v367 = vld [vmem:[%s328 + $0xf8] sm:$0xff]
      %400 = vrot.lane.b32.xlu0 %v336, 127
      %v401 = vpop.permute.xlu0 %400
      %402 = vrot.lane.b32.xlu0 %v337, 127
      %v403 = vpop.permute.xlu0 %402
      %404 = vrot.lane.b32.xlu0 %v338, 127
      %v405 = vpop.permute.xlu0 %404
      %406 = vrot.lane.b32.xlu0 %v339, 127
      %v407 = vpop.permute.xlu0 %406
      %408 = vrot.lane.b32.xlu0 %v340, 127
      %v409 = vpop.permute.xlu0 %408
      %410 = vrot.lane.b32.xlu0 %v341, 127
      %v411 = vpop.permute.xlu0 %410
      %412 = vrot.lane.b32.xlu0 %v342, 127
      %v413 = vpop.permute.xlu0 %412
      %414 = vrot.lane.b32.xlu0 %v343, 127
      %v415 = vpop.permute.xlu0 %414
      %416 = vrot.lane.b32.xlu0 %v344, 127
      %v417 = vpop.permute.xlu0 %416
      %418 = vrot.lane.b32.xlu0 %v345, 127
      %v419 = vpop.permute.xlu0 %418
      %420 = vrot.lane.b32.xlu0 %v346, 127
      %v421 = vpop.permute.xlu0 %420
      %422 = vrot.lane.b32.xlu0 %v347, 127
      %v423 = vpop.permute.xlu0 %422
      %424 = vrot.lane.b32.xlu0 %v348, 127
      %v425 = vpop.permute.xlu0 %424
      %426 = vrot.lane.b32.xlu0 %v349, 127
      %v427 = vpop.permute.xlu0 %426
      %428 = vrot.lane.b32.xlu0 %v350, 127
      %v429 = vpop.permute.xlu0 %428
      %430 = vrot.lane.b32.xlu0 %v351, 127
      %v431 = vpop.permute.xlu0 %430
      %432 = vrot.lane.b32.xlu0 %v352, 127
      %v433 = vpop.permute.xlu0 %432
      %434 = vrot.lane.b32.xlu0 %v353, 127
      %v435 = vpop.permute.xlu0 %434
      %436 = vrot.lane.b32.xlu0 %v354, 127
      %v437 = vpop.permute.xlu0 %436
      %438 = vrot.lane.b32.xlu0 %v355, 127
      %v439 = vpop.permute.xlu0 %438
      %440 = vrot.lane.b32.xlu0 %v356, 127
      %v441 = vpop.permute.xlu0 %440
      %442 = vrot.lane.b32.xlu0 %v357, 127
      %v443 = vpop.permute.xlu0 %442
      %444 = vrot.lane.b32.xlu0 %v358, 127
      %v445 = vpop.permute.xlu0 %444
      %446 = vrot.lane.b32.xlu0 %v359, 127
      %v447 = vpop.permute.xlu0 %446
      %448 = vrot.lane.b32.xlu0 %v360, 127
      %v449 = vpop.permute.xlu0 %448
      %450 = vrot.lane.b32.xlu0 %v361, 127
      %v451 = vpop.permute.xlu0 %450
      %452 = vrot.lane.b32.xlu0 %v362, 127
      %v453 = vpop.permute.xlu0 %452
      %454 = vrot.lane.b32.xlu0 %v363, 127
      %v455 = vpop.permute.xlu0 %454
      %456 = vrot.lane.b32.xlu0 %v364, 127
      %v457 = vpop.permute.xlu0 %456
      %458 = vrot.lane.b32.xlu0 %v365, 127
      %v459 = vpop.permute.xlu0 %458
      %460 = vrot.lane.b32.xlu0 %v366, 127
      %v461 = vpop.permute.xlu0 %460
      %462 = vrot.lane.b32.xlu0 %v367, 127
      %v463 = vpop.permute.xlu0 %462
      %v496 = vmul.f32 %v336, %v401
      %v497 = vmul.f32 %v337, %v403
      %v498 = vmul.f32 %v338, %v405
      %v499 = vmul.f32 %v339, %v407
      %v500 = vmul.f32 %v340, %v409
      %v501 = vmul.f32 %v341, %v411
      %v502 = vmul.f32 %v342, %v413
      %v503 = vmul.f32 %v343, %v415
      %v504 = vmul.f32 %v344, %v417
      %v505 = vmul.f32 %v345, %v419
      %v506 = vmul.f32 %v346, %v421
      %v507 = vmul.f32 %v347, %v423
      %v508 = vmul.f32 %v348, %v425
      %v509 = vmul.f32 %v349, %v427
      %v510 = vmul.f32 %v350, %v429
      %v511 = vmul.f32 %v351, %v431
      %v512 = vmul.f32 %v352, %v433
      %v513 = vmul.f32 %v353, %v435
      %v514 = vmul.f32 %v354, %v437
      %v515 = vmul.f32 %v355, %v439
      %v516 = vmul.f32 %v356, %v441
      %v517 = vmul.f32 %v357, %v443
      %v518 = vmul.f32 %v358, %v445
      %v519 = vmul.f32 %v359, %v447
      %v520 = vmul.f32 %v360, %v449
      %v521 = vmul.f32 %v361, %v451
      %v522 = vmul.f32 %v362, %v453
      %v523 = vmul.f32 %v363, %v455
      %v524 = vmul.f32 %v364, %v457
      %v525 = vmul.f32 %v365, %v459
      %v526 = vmul.f32 %v366, %v461
      %v527 = vmul.f32 %v367, %v463
      %528 = vrot.lane.b32.xlu0 %v336, 126
      %v529 = vpop.permute.xlu0 %528
      %530 = vrot.lane.b32.xlu0 %v337, 126
      %v531 = vpop.permute.xlu0 %530
      %532 = vrot.lane.b32.xlu0 %v338, 126
      %v533 = vpop.permute.xlu0 %532
      %534 = vrot.lane.b32.xlu0 %v339, 126
      %v535 = vpop.permute.xlu0 %534
      %536 = vrot.lane.b32.xlu0 %v340, 126
      %v537 = vpop.permute.xlu0 %536
      %538 = vrot.lane.b32.xlu0 %v341, 126
      %v539 = vpop.permute.xlu0 %538
      %540 = vrot.lane.b32.xlu0 %v342, 126
      %v541 = vpop.permute.xlu0 %540
      %542 = vrot.lane.b32.xlu0 %v343, 126
      %v543 = vpop.permute.xlu0 %542
      %544 = vrot.lane.b32.xlu0 %v344, 126
      %v545 = vpop.permute.xlu0 %544
      %546 = vrot.lane.b32.xlu0 %v345, 126
      %v547 = vpop.permute.xlu0 %546
      %548 = vrot.lane.b32.xlu0 %v346, 126
      %v549 = vpop.permute.xlu0 %548
      %550 = vrot.lane.b32.xlu0 %v347, 126
      %v551 = vpop.permute.xlu0 %550
      %552 = vrot.lane.b32.xlu0 %v348, 126
      %v553 = vpop.permute.xlu0 %552
      %554 = vrot.lane.b32.xlu0 %v349, 126
      %v555 = vpop.permute.xlu0 %554
      %556 = vrot.lane.b32.xlu0 %v350, 126
      %v557 = vpop.permute.xlu0 %556
      %558 = vrot.lane.b32.xlu0 %v351, 126
      %v559 = vpop.permute.xlu0 %558
      %560 = vrot.lane.b32.xlu0 %v352, 126
      %v561 = vpop.permute.xlu0 %560
      %562 = vrot.lane.b32.xlu0 %v353, 126
      %v563 = vpop.permute.xlu0 %562
      %564 = vrot.lane.b32.xlu0 %v354, 126
      %v565 = vpop.permute.xlu0 %564
      %566 = vrot.lane.b32.xlu0 %v355, 126
      %v567 = vpop.permute.xlu0 %566
      %568 = vrot.lane.b32.xlu0 %v356, 126
      %v569 = vpop.permute.xlu0 %568
      %570 = vrot.lane.b32.xlu0 %v357, 126
      %v571 = vpop.permute.xlu0 %570
      %572 = vrot.lane.b32.xlu0 %v358, 126
      %v573 = vpop.permute.xlu0 %572
      %574 = vrot.lane.b32.xlu0 %v359, 126
      %v575 = vpop.permute.xlu0 %574
      %576 = vrot.lane.b32.xlu0 %v360, 126
      %v577 = vpop.permute.xlu0 %576
      %578 = vrot.lane.b32.xlu0 %v361, 126
      %v579 = vpop.permute.xlu0 %578
      %580 = vrot.lane.b32.xlu0 %v362, 126
      %v581 = vpop.permute.xlu0 %580
      %582 = vrot.lane.b32.xlu0 %v363, 126
      %v583 = vpop.permute.xlu0 %582
      %584 = vrot.lane.b32.xlu0 %v364, 126
      %v585 = vpop.permute.xlu0 %584
      %586 = vrot.lane.b32.xlu0 %v365, 126
      %v587 = vpop.permute.xlu0 %586
      %588 = vrot.lane.b32.xlu0 %v366, 126
      %v589 = vpop.permute.xlu0 %588
      %590 = vrot.lane.b32.xlu0 %v367, 126
      %v591 = vpop.permute.xlu0 %590
      %v624 = vmul.f32 %v496, %v529
      %v625 = vmul.f32 %v497, %v531
      %v626 = vmul.f32 %v498, %v533
      %v627 = vmul.f32 %v499, %v535
      %v628 = vmul.f32 %v500, %v537
      %v629 = vmul.f32 %v501, %v539
      %v630 = vmul.f32 %v502, %v541
      %v631 = vmul.f32 %v503, %v543
      %v632 = vmul.f32 %v504, %v545
      %v633 = vmul.f32 %v505, %v547
      %v634 = vmul.f32 %v506, %v549
      %v635 = vmul.f32 %v507, %v551
      %v636 = vmul.f32 %v508, %v553
      %v637 = vmul.f32 %v509, %v555
      %v638 = vmul.f32 %v510, %v557
      %v639 = vmul.f32 %v511, %v559
      %v640 = vmul.f32 %v512, %v561
      %v641 = vmul.f32 %v513, %v563
      %v642 = vmul.f32 %v514, %v565
      %v643 = vmul.f32 %v515, %v567
      %v644 = vmul.f32 %v516, %v569
      %v645 = vmul.f32 %v517, %v571
      %v646 = vmul.f32 %v518, %v573
      %v647 = vmul.f32 %v519, %v575
      %v648 = vmul.f32 %v520, %v577
      %v649 = vmul.f32 %v521, %v579
      %v650 = vmul.f32 %v522, %v581
      %v651 = vmul.f32 %v523, %v583
      %v652 = vmul.f32 %v524, %v585
      %v653 = vmul.f32 %v525, %v587
      %v654 = vmul.f32 %v526, %v589
      %v655 = vmul.f32 %v527, %v591
      %v656 = vsub.f32 1.0, %v336
      %v657 = vsub.f32 1.0, %v337
      %v658 = vsub.f32 1.0, %v338
      %v659 = vsub.f32 1.0, %v339
      %v660 = vsub.f32 1.0, %v340
      %v661 = vsub.f32 1.0, %v341
      %v662 = vsub.f32 1.0, %v342
      %v663 = vsub.f32 1.0, %v343
      %v664 = vsub.f32 1.0, %v344
      %v665 = vsub.f32 1.0, %v345
      %v666 = vsub.f32 1.0, %v346
      %v667 = vsub.f32 1.0, %v347
      %v668 = vsub.f32 1.0, %v348
      %v669 = vsub.f32 1.0, %v349
      %v670 = vsub.f32 1.0, %v350
      %v671 = vsub.f32 1.0, %v351
      %v672 = vsub.f32 1.0, %v352
      %v673 = vsub.f32 1.0, %v353
      %v674 = vsub.f32 1.0, %v354
      %v675 = vsub.f32 1.0, %v355
      %v676 = vsub.f32 1.0, %v356
      %v677 = vsub.f32 1.0, %v357
      %v678 = vsub.f32 1.0, %v358
      %v679 = vsub.f32 1.0, %v359
      %v680 = vsub.f32 1.0, %v360
      %v681 = vsub.f32 1.0, %v361
      %v682 = vsub.f32 1.0, %v362
      %v683 = vsub.f32 1.0, %v363
      %v684 = vsub.f32 1.0, %v364
      %v685 = vsub.f32 1.0, %v365
      %v686 = vsub.f32 1.0, %v366
      %v687 = vsub.f32 1.0, %v367
      %v688 = vmul.f32 %v624, %v656
      %v689 = vmul.f32 %v625, %v657
      %v690 = vmul.f32 %v626, %v658
      %v691 = vmul.f32 %v627, %v659
      %v692 = vmul.f32 %v628, %v660
      %v693 = vmul.f32 %v629, %v661
      %v694 = vmul.f32 %v630, %v662
      %v695 = vmul.f32 %v631, %v663
      %v696 = vmul.f32 %v632, %v664
      %v697 = vmul.f32 %v633, %v665
      %v698 = vmul.f32 %v634, %v666
      %v699 = vmul.f32 %v635, %v667
      %v700 = vmul.f32 %v636, %v668
      %v701 = vmul.f32 %v637, %v669
      %v702 = vmul.f32 %v638, %v670
      %v703 = vmul.f32 %v639, %v671
      %v704 = vmul.f32 %v640, %v672
      %v705 = vmul.f32 %v641, %v673
      %v706 = vmul.f32 %v642, %v674
      %v707 = vmul.f32 %v643, %v675
      %v708 = vmul.f32 %v644, %v676
      %v709 = vmul.f32 %v645, %v677
      %v710 = vmul.f32 %v646, %v678
      %v711 = vmul.f32 %v647, %v679
      %v712 = vmul.f32 %v648, %v680
      %v713 = vmul.f32 %v649, %v681
      %v714 = vmul.f32 %v650, %v682
      %v715 = vmul.f32 %v651, %v683
      %v716 = vmul.f32 %v652, %v684
      %v717 = vmul.f32 %v653, %v685
      %v718 = vmul.f32 %v654, %v686
      %v719 = vmul.f32 %v655, %v687
      %752 = vrot.lane.b32.xlu0 %v656, 127
      %v753 = vpop.permute.xlu0 %752
      %754 = vrot.lane.b32.xlu0 %v657, 127
      %v755 = vpop.permute.xlu0 %754
      %756 = vrot.lane.b32.xlu0 %v658, 127
      %v757 = vpop.permute.xlu0 %756
      %758 = vrot.lane.b32.xlu0 %v659, 127
      %v759 = vpop.permute.xlu0 %758
      %760 = vrot.lane.b32.xlu0 %v660, 127
      %v761 = vpop.permute.xlu0 %760
      %762 = vrot.lane.b32.xlu0 %v661, 127
      %v763 = vpop.permute.xlu0 %762
      %764 = vrot.lane.b32.xlu0 %v662, 127
      %v765 = vpop.permute.xlu0 %764
      %766 = vrot.lane.b32.xlu0 %v663, 127
      %v767 = vpop.permute.xlu0 %766
      %768 = vrot.lane.b32.xlu0 %v664, 127
      %v769 = vpop.permute.xlu0 %768
      %770 = vrot.lane.b32.xlu0 %v665, 127
      %v771 = vpop.permute.xlu0 %770
      %772 = vrot.lane.b32.xlu0 %v666, 127
      %v773 = vpop.permute.xlu0 %772
      %774 = vrot.lane.b32.xlu0 %v667, 127
      %v775 = vpop.permute.xlu0 %774
      %776 = vrot.lane.b32.xlu0 %v668, 127
      %v777 = vpop.permute.xlu0 %776
      %778 = vrot.lane.b32.xlu0 %v669, 127
      %v779 = vpop.permute.xlu0 %778
      %780 = vrot.lane.b32.xlu0 %v670, 127
      %v781 = vpop.permute.xlu0 %780
      %782 = vrot.lane.b32.xlu0 %v671, 127
      %v783 = vpop.permute.xlu0 %782
      %784 = vrot.lane.b32.xlu0 %v672, 127
      %v785 = vpop.permute.xlu0 %784
      %786 = vrot.lane.b32.xlu0 %v673, 127
      %v787 = vpop.permute.xlu0 %786
      %788 = vrot.lane.b32.xlu0 %v674, 127
      %v789 = vpop.permute.xlu0 %788
      %790 = vrot.lane.b32.xlu0 %v675, 127
      %v791 = vpop.permute.xlu0 %790
      %792 = vrot.lane.b32.xlu0 %v676, 127
      %v793 = vpop.permute.xlu0 %792
      %794 = vrot.lane.b32.xlu0 %v677, 127
      %v795 = vpop.permute.xlu0 %794
      %796 = vrot.lane.b32.xlu0 %v678, 127
      %v797 = vpop.permute.xlu0 %796
      %798 = vrot.lane.b32.xlu0 %v679, 127
      %v799 = vpop.permute.xlu0 %798
      %800 = vrot.lane.b32.xlu0 %v680, 127
      %v801 = vpop.permute.xlu0 %800
      %802 = vrot.lane.b32.xlu0 %v681, 127
      %v803 = vpop.permute.xlu0 %802
      %804 = vrot.lane.b32.xlu0 %v682, 127
      %v805 = vpop.permute.xlu0 %804
      %806 = vrot.lane.b32.xlu0 %v683, 127
      %v807 = vpop.permute.xlu0 %806
      %808 = vrot.lane.b32.xlu0 %v684, 127
      %v809 = vpop.permute.xlu0 %808
      %810 = vrot.lane.b32.xlu0 %v685, 127
      %v811 = vpop.permute.xlu0 %810
      %812 = vrot.lane.b32.xlu0 %v686, 127
      %v813 = vpop.permute.xlu0 %812
      %814 = vrot.lane.b32.xlu0 %v687, 127
      %v815 = vpop.permute.xlu0 %814
      %v848 = vmul.f32 %v688, %v753
      %v849 = vmul.f32 %v689, %v755
      %v850 = vmul.f32 %v690, %v757
      %v851 = vmul.f32 %v691, %v759
      %v852 = vmul.f32 %v692, %v761
      %v853 = vmul.f32 %v693, %v763
      %v854 = vmul.f32 %v694, %v765
      %v855 = vmul.f32 %v695, %v767
      %v856 = vmul.f32 %v696, %v769
      %v857 = vmul.f32 %v697, %v771
      %v858 = vmul.f32 %v698, %v773
      %v859 = vmul.f32 %v699, %v775
      %v860 = vmul.f32 %v700, %v777
      %v861 = vmul.f32 %v701, %v779
      %v862 = vmul.f32 %v702, %v781
      %v863 = vmul.f32 %v703, %v783
      %v864 = vmul.f32 %v704, %v785
      %v865 = vmul.f32 %v705, %v787
      %v866 = vmul.f32 %v706, %v789
      %v867 = vmul.f32 %v707, %v791
      %v868 = vmul.f32 %v708, %v793
      %v869 = vmul.f32 %v709, %v795
      %v870 = vmul.f32 %v710, %v797
      %v871 = vmul.f32 %v711, %v799
      %v872 = vmul.f32 %v712, %v801
      %v873 = vmul.f32 %v713, %v803
      %v874 = vmul.f32 %v714, %v805
      %v875 = vmul.f32 %v715, %v807
      %v876 = vmul.f32 %v716, %v809
      %v877 = vmul.f32 %v717, %v811
      %v878 = vmul.f32 %v718, %v813
      %v879 = vmul.f32 %v719, %v815
      %v880 = vld [vmem:[%s1] sm:$0xff]
      %v881 = vld [vmem:[%s1 + $0x8] sm:$0xff]
      %v882 = vld [vmem:[%s1 + $0x10] sm:$0xff]
      %v883 = vld [vmem:[%s1 + $0x18] sm:$0xff]
      %v884 = vld [vmem:[%s1 + $0x20] sm:$0xff]
      %v885 = vld [vmem:[%s1 + $0x28] sm:$0xff]
      %v886 = vld [vmem:[%s1 + $0x30] sm:$0xff]
      %v887 = vld [vmem:[%s1 + $0x38] sm:$0xff]
      %v888 = vld [vmem:[%s1 + $0x40] sm:$0xff]
      %v889 = vld [vmem:[%s1 + $0x48] sm:$0xff]
      %v890 = vld [vmem:[%s1 + $0x50] sm:$0xff]
      %v891 = vld [vmem:[%s1 + $0x58] sm:$0xff]
      %v892 = vld [vmem:[%s1 + $0x60] sm:$0xff]
      %v893 = vld [vmem:[%s1 + $0x68] sm:$0xff]
      %v894 = vld [vmem:[%s1 + $0x70] sm:$0xff]
      %v895 = vld [vmem:[%s1 + $0x78] sm:$0xff]
      %v896 = vld [vmem:[%s2] sm:$0x1]
      %v898 = vlaneseq
      %v899 = vshrl.u32 %v898, 7
      %v900 = vsub.s32 0, %v899
      %v901 = vrot.slane %v896, %v900
      %903 = vmatprep.subr.mxu0 0.0
      %904 = vmatpush1.msra.mxu0 %v895
      %905 = vmatprep.subr.mxu0 0.0
      %906 = vmatpush1.msra.mxu0 %v894
      %907 = vmatprep.subr.mxu0 0.0
      %908 = vmatpush1.msra.mxu0 %v893
      %909 = vmatprep.subr.mxu0 0.0
      %910 = vmatpush1.msra.mxu0 %v892
      %911 = vmatprep.subr.mxu0 0.0
      %912 = vmatpush1.msra.mxu0 %v891
      %913 = vmatprep.subr.mxu0 0.0
      %914 = vmatpush1.msra.mxu0 %v890
      %915 = vmatprep.subr.mxu0 0.0
      %916 = vmatpush1.msra.mxu0 %v889
      %917 = vmatprep.subr.mxu0 0.0
      %918 = vmatpush1.msra.mxu0 %v888
      %919 = vmatprep.subr.mxu0 0.0
      %920 = vmatpush1.msra.mxu0 %v887
      %921 = vmatprep.subr.mxu0 0.0
      %922 = vmatpush1.msra.mxu0 %v886
      %923 = vmatprep.subr.mxu0 0.0
      %924 = vmatpush1.msra.mxu0 %v885
      %925 = vmatprep.subr.mxu0 0.0
      %926 = vmatpush1.msra.mxu0 %v884
      %927 = vmatprep.subr.mxu0 0.0
      %928 = vmatpush1.msra.mxu0 %v883
      %929 = vmatprep.subr.mxu0 0.0
      %930 = vmatpush1.msra.mxu0 %v882
      %931 = vmatprep.subr.mxu0 0.0
      %932 = vmatpush1.msra.mxu0 %v881
      %933 = vmatprep.subr.mxu0 0.0
      %934 = vmatpush1.msra.mxu0 %v880
      %935 = vmatprep.subr.mxu0 0.0
      %936 = vmatpush2.msra.mxu0 0.0
      %937 = vmatprep.subr.mxu0 0.0
      %938 = vmatpush2.msra.mxu0 0.0
      %939 = vmatprep.subr.mxu0 0.0
      %940 = vmatpush2.msra.mxu0 0.0
      %941 = vmatprep.subr.mxu0 0.0
      %942 = vmatpush2.msra.mxu0 0.0
      %943 = vmatprep.subr.mxu0 0.0
      %944 = vmatpush2.msra.mxu0 0.0
      %945 = vmatprep.subr.mxu0 0.0
      %946 = vmatpush2.msra.mxu0 0.0
      %947 = vmatprep.subr.mxu0 0.0
      %948 = vmatpush2.msra.mxu0 0.0
      %949 = vmatprep.subr.mxu0 0.0
      %950 = vmatpush2.msra.mxu0 0.0
      %951 = vmatprep.subr.mxu0 0.0
      %952 = vmatpush2.msra.mxu0 0.0
      %953 = vmatprep.subr.mxu0 0.0
      %954 = vmatpush2.msra.mxu0 0.0
      %955 = vmatprep.subr.mxu0 0.0
      %956 = vmatpush2.msra.mxu0 0.0
      %957 = vmatprep.subr.mxu0 0.0
      %958 = vmatpush2.msra.mxu0 0.0
      %959 = vmatprep.subr.mxu0 0.0
      %960 = vmatpush2.msra.mxu0 0.0
      %961 = vmatprep.subr.mxu0 0.0
      %962 = vmatpush2.msra.mxu0 0.0
      %963 = vmatprep.subr.mxu0 0.0
      %964 = vmatpush2.msra.mxu0 0.0
      %965 = vmatprep.subr.mxu0 0.0
      %966 = vmatpush2.msra.mxu0 0.0
      %967 = vmatprep.mubr.f32.mxu0 0.0
      %968 = vmatmul.mubr.f32.gmra.mxu0 %v336
      %v969 = vpop.f32.mrf.mxu0
      %v970 = vadd.f32 %v901, %v969
      %v971 = vpop.f32.mrf.mxu0
      %972 = vmatprep.mubr.f32.mxu0 0.0
      %973 = vmatmul.mubr.f32.gmra.mxu0 %v337
      %v974 = vpop.f32.mrf.mxu0
      %v975 = vadd.f32 %v901, %v974
      %v976 = vpop.f32.mrf.mxu0
      %977 = vmatprep.mubr.f32.mxu0 0.0
      %978 = vmatmul.mubr.f32.gmra.mxu0 %v338
      %v979 = vpop.f32.mrf.mxu0
      %v980 = vadd.f32 %v901, %v979
      %v981 = vpop.f32.mrf.mxu0
      %982 = vmatprep.mubr.f32.mxu0 0.0
      %983 = vmatmul.mubr.f32.gmra.mxu0 %v339
      %v984 = vpop.f32.mrf.mxu0
      %v985 = vadd.f32 %v901, %v984
      %v986 = vpop.f32.mrf.mxu0
      %987 = vmatprep.mubr.f32.mxu0 0.0
      %988 = vmatmul.mubr.f32.gmra.mxu0 %v340
      %v989 = vpop.f32.mrf.mxu0
      %v990 = vadd.f32 %v901, %v989
      %v991 = vpop.f32.mrf.mxu0
      %992 = vmatprep.mubr.f32.mxu0 0.0
      %993 = vmatmul.mubr.f32.gmra.mxu0 %v341
      %v994 = vpop.f32.mrf.mxu0
      %v995 = vadd.f32 %v901, %v994
      %v996 = vpop.f32.mrf.mxu0
      %997 = vmatprep.mubr.f32.mxu0 0.0
      %998 = vmatmul.mubr.f32.gmra.mxu0 %v342
      %v999 = vpop.f32.mrf.mxu0
      %v1000 = vadd.f32 %v901, %v999
      %v1001 = vpop.f32.mrf.mxu0
      %1002 = vmatprep.mubr.f32.mxu0 0.0
      %1003 = vmatmul.mubr.f32.gmra.mxu0 %v343
      %v1004 = vpop.f32.mrf.mxu0
      %v1005 = vadd.f32 %v901, %v1004
      %v1006 = vpop.f32.mrf.mxu0
      %1007 = vmatprep.mubr.f32.mxu0 0.0
      %1008 = vmatmul.mubr.f32.gmra.mxu0 %v344
      %v1009 = vpop.f32.mrf.mxu0
      %v1010 = vadd.f32 %v901, %v1009
      %v1011 = vpop.f32.mrf.mxu0
      %1012 = vmatprep.mubr.f32.mxu0 0.0
      %1013 = vmatmul.mubr.f32.gmra.mxu0 %v345
      %v1014 = vpop.f32.mrf.mxu0
      %v1015 = vadd.f32 %v901, %v1014
      %v1016 = vpop.f32.mrf.mxu0
      %1017 = vmatprep.mubr.f32.mxu0 0.0
      %1018 = vmatmul.mubr.f32.gmra.mxu0 %v346
      %v1019 = vpop.f32.mrf.mxu0
      %v1020 = vadd.f32 %v901, %v1019
      %v1021 = vpop.f32.mrf.mxu0
      %1022 = vmatprep.mubr.f32.mxu0 0.0
      %1023 = vmatmul.mubr.f32.gmra.mxu0 %v347
      %v1024 = vpop.f32.mrf.mxu0
      %v1025 = vadd.f32 %v901, %v1024
      %v1026 = vpop.f32.mrf.mxu0
      %1027 = vmatprep.mubr.f32.mxu0 0.0
      %1028 = vmatmul.mubr.f32.gmra.mxu0 %v348
      %v1029 = vpop.f32.mrf.mxu0
      %v1030 = vadd.f32 %v901, %v1029
      %v1031 = vpop.f32.mrf.mxu0
      %1032 = vmatprep.mubr.f32.mxu0 0.0
      %1033 = vmatmul.mubr.f32.gmra.mxu0 %v349
      %v1034 = vpop.f32.mrf.mxu0
      %v1035 = vadd.f32 %v901, %v1034
      %v1036 = vpop.f32.mrf.mxu0
      %1037 = vmatprep.mubr.f32.mxu0 0.0
      %1038 = vmatmul.mubr.f32.gmra.mxu0 %v350
      %v1039 = vpop.f32.mrf.mxu0
      %v1040 = vadd.f32 %v901, %v1039
      %v1041 = vpop.f32.mrf.mxu0
      %1042 = vmatprep.mubr.f32.mxu0 0.0
      %1043 = vmatmul.mubr.f32.gmra.mxu0 %v351
      %v1044 = vpop.f32.mrf.mxu0
      %v1045 = vadd.f32 %v901, %v1044
      %v1046 = vpop.f32.mrf.mxu0
      %1047 = vmatprep.mubr.f32.mxu0 0.0
      %1048 = vmatmul.mubr.f32.gmra.mxu0 %v352
      %v1049 = vpop.f32.mrf.mxu0
      %v1050 = vadd.f32 %v901, %v1049
      %v1051 = vpop.f32.mrf.mxu0
      %1052 = vmatprep.mubr.f32.mxu0 0.0
      %1053 = vmatmul.mubr.f32.gmra.mxu0 %v353
      %v1054 = vpop.f32.mrf.mxu0
      %v1055 = vadd.f32 %v901, %v1054
      %v1056 = vpop.f32.mrf.mxu0
      %1057 = vmatprep.mubr.f32.mxu0 0.0
      %1058 = vmatmul.mubr.f32.gmra.mxu0 %v354
      %v1059 = vpop.f32.mrf.mxu0
      %v1060 = vadd.f32 %v901, %v1059
      %v1061 = vpop.f32.mrf.mxu0
      %1062 = vmatprep.mubr.f32.mxu0 0.0
      %1063 = vmatmul.mubr.f32.gmra.mxu0 %v355
      %v1064 = vpop.f32.mrf.mxu0
      %v1065 = vadd.f32 %v901, %v1064
      %v1066 = vpop.f32.mrf.mxu0
      %1067 = vmatprep.mubr.f32.mxu0 0.0
      %1068 = vmatmul.mubr.f32.gmra.mxu0 %v356
      %v1069 = vpop.f32.mrf.mxu0
      %v1070 = vadd.f32 %v901, %v1069
      %v1071 = vpop.f32.mrf.mxu0
      %1072 = vmatprep.mubr.f32.mxu0 0.0
      %1073 = vmatmul.mubr.f32.gmra.mxu0 %v357
      %v1074 = vpop.f32.mrf.mxu0
      %v1075 = vadd.f32 %v901, %v1074
      %v1076 = vpop.f32.mrf.mxu0
      %1077 = vmatprep.mubr.f32.mxu0 0.0
      %1078 = vmatmul.mubr.f32.gmra.mxu0 %v358
      %v1079 = vpop.f32.mrf.mxu0
      %v1080 = vadd.f32 %v901, %v1079
      %v1081 = vpop.f32.mrf.mxu0
      %1082 = vmatprep.mubr.f32.mxu0 0.0
      %1083 = vmatmul.mubr.f32.gmra.mxu0 %v359
      %v1084 = vpop.f32.mrf.mxu0
      %v1085 = vadd.f32 %v901, %v1084
      %v1086 = vpop.f32.mrf.mxu0
      %1087 = vmatprep.mubr.f32.mxu0 0.0
      %1088 = vmatmul.mubr.f32.gmra.mxu0 %v360
      %v1089 = vpop.f32.mrf.mxu0
      %v1090 = vadd.f32 %v901, %v1089
      %v1091 = vpop.f32.mrf.mxu0
      %1092 = vmatprep.mubr.f32.mxu0 0.0
      %1093 = vmatmul.mubr.f32.gmra.mxu0 %v361
      %v1094 = vpop.f32.mrf.mxu0
      %v1095 = vadd.f32 %v901, %v1094
      %v1096 = vpop.f32.mrf.mxu0
      %1097 = vmatprep.mubr.f32.mxu0 0.0
      %1098 = vmatmul.mubr.f32.gmra.mxu0 %v362
      %v1099 = vpop.f32.mrf.mxu0
      %v1100 = vadd.f32 %v901, %v1099
      %v1101 = vpop.f32.mrf.mxu0
      %1102 = vmatprep.mubr.f32.mxu0 0.0
      %1103 = vmatmul.mubr.f32.gmra.mxu0 %v363
      %v1104 = vpop.f32.mrf.mxu0
      %v1105 = vadd.f32 %v901, %v1104
      %v1106 = vpop.f32.mrf.mxu0
      %1107 = vmatprep.mubr.f32.mxu0 0.0
      %1108 = vmatmul.mubr.f32.gmra.mxu0 %v364
      %v1109 = vpop.f32.mrf.mxu0
      %v1110 = vadd.f32 %v901, %v1109
      %v1111 = vpop.f32.mrf.mxu0
      %1112 = vmatprep.mubr.f32.mxu0 0.0
      %1113 = vmatmul.mubr.f32.gmra.mxu0 %v365
      %v1114 = vpop.f32.mrf.mxu0
      %v1115 = vadd.f32 %v901, %v1114
      %v1116 = vpop.f32.mrf.mxu0
      %1117 = vmatprep.mubr.f32.mxu0 0.0
      %1118 = vmatmul.mubr.f32.gmra.mxu0 %v366
      %v1119 = vpop.f32.mrf.mxu0
      %v1120 = vadd.f32 %v901, %v1119
      %v1121 = vpop.f32.mrf.mxu0
      %1122 = vmatprep.mubr.f32.mxu0 0.0
      %1123 = vmatmul.mubr.f32.gmra.mxu0 %v367
      %v1124 = vpop.f32.mrf.mxu0
      %v1125 = vadd.f32 %v901, %v1124
      %v1126 = vpop.f32.mrf.mxu0
      %1127 = vdwg.mxu0
      %v1128 = vld [vmem:[%s3] sm:$0xff]
      %v1129 = vld [vmem:[%s3 + $0x8] sm:$0xff]
      %v1130 = vld [vmem:[%s3 + $0x10] sm:$0xff]
      %v1131 = vld [vmem:[%s3 + $0x18] sm:$0xff]
      %v1132 = vld [vmem:[%s3 + $0x20] sm:$0xff]
      %v1133 = vld [vmem:[%s3 + $0x28] sm:$0xff]
      %v1134 = vld [vmem:[%s3 + $0x30] sm:$0xff]
      %v1135 = vld [vmem:[%s3 + $0x38] sm:$0xff]
      %v1136 = vld [vmem:[%s3 + $0x40] sm:$0xff]
      %v1137 = vld [vmem:[%s3 + $0x48] sm:$0xff]
      %v1138 = vld [vmem:[%s3 + $0x50] sm:$0xff]
      %v1139 = vld [vmem:[%s3 + $0x58] sm:$0xff]
      %v1140 = vld [vmem:[%s3 + $0x60] sm:$0xff]
      %v1141 = vld [vmem:[%s3 + $0x68] sm:$0xff]
      %v1142 = vld [vmem:[%s3 + $0x70] sm:$0xff]
      %v1143 = vld [vmem:[%s3 + $0x78] sm:$0xff]
      %v1144 = vld [vmem:[%s4] sm:$0x1]
      %v1146 = vlaneseq
      %v1147 = vshrl.u32 %v1146, 7
      %v1148 = vsub.s32 0, %v1147
      %v1149 = vrot.slane %v1144, %v1148
      %1151 = vmatprep.subr.mxu0 0.0
      %1152 = vmatpush1.msra.mxu0 %v1143
      %1153 = vmatprep.subr.mxu0 0.0
      %1154 = vmatpush1.msra.mxu0 %v1142
      %1155 = vmatprep.subr.mxu0 0.0
      %1156 = vmatpush1.msra.mxu0 %v1141
      %1157 = vmatprep.subr.mxu0 0.0
      %1158 = vmatpush1.msra.mxu0 %v1140
      %1159 = vmatprep.subr.mxu0 0.0
      %1160 = vmatpush1.msra.mxu0 %v1139
      %1161 = vmatprep.subr.mxu0 0.0
      %1162 = vmatpush1.msra.mxu0 %v1138
      %1163 = vmatprep.subr.mxu0 0.0
      %1164 = vmatpush1.msra.mxu0 %v1137
      %1165 = vmatprep.subr.mxu0 0.0
      %1166 = vmatpush1.msra.mxu0 %v1136
      %1167 = vmatprep.subr.mxu0 0.0
      %1168 = vmatpush1.msra.mxu0 %v1135
      %1169 = vmatprep.subr.mxu0 0.0
      %1170 = vmatpush1.msra.mxu0 %v1134
      %1171 = vmatprep.subr.mxu0 0.0
      %1172 = vmatpush1.msra.mxu0 %v1133
      %1173 = vmatprep.subr.mxu0 0.0
      %1174 = vmatpush1.msra.mxu0 %v1132
      %1175 = vmatprep.subr.mxu0 0.0
      %1176 = vmatpush1.msra.mxu0 %v1131
      %1177 = vmatprep.subr.mxu0 0.0
      %1178 = vmatpush1.msra.mxu0 %v1130
      %1179 = vmatprep.subr.mxu0 0.0
      %1180 = vmatpush1.msra.mxu0 %v1129
      %1181 = vmatprep.subr.mxu0 0.0
      %1182 = vmatpush1.msra.mxu0 %v1128
      %1183 = vmatprep.subr.mxu0 0.0
      %1184 = vmatpush2.msra.mxu0 0.0
      %1185 = vmatprep.subr.mxu0 0.0
      %1186 = vmatpush2.msra.mxu0 0.0
      %1187 = vmatprep.subr.mxu0 0.0
      %1188 = vmatpush2.msra.mxu0 0.0
      %1189 = vmatprep.subr.mxu0 0.0
      %1190 = vmatpush2.msra.mxu0 0.0
      %1191 = vmatprep.subr.mxu0 0.0
      %1192 = vmatpush2.msra.mxu0 0.0
      %1193 = vmatprep.subr.mxu0 0.0
      %1194 = vmatpush2.msra.mxu0 0.0
      %1195 = vmatprep.subr.mxu0 0.0
      %1196 = vmatpush2.msra.mxu0 0.0
      %1197 = vmatprep.subr.mxu0 0.0
      %1198 = vmatpush2.msra.mxu0 0.0
      %1199 = vmatprep.subr.mxu0 0.0
      %1200 = vmatpush2.msra.mxu0 0.0
      %1201 = vmatprep.subr.mxu0 0.0
      %1202 = vmatpush2.msra.mxu0 0.0
      %1203 = vmatprep.subr.mxu0 0.0
      %1204 = vmatpush2.msra.mxu0 0.0
      %1205 = vmatprep.subr.mxu0 0.0
      %1206 = vmatpush2.msra.mxu0 0.0
      %1207 = vmatprep.subr.mxu0 0.0
      %1208 = vmatpush2.msra.mxu0 0.0
      %1209 = vmatprep.subr.mxu0 0.0
      %1210 = vmatpush2.msra.mxu0 0.0
      %1211 = vmatprep.subr.mxu0 0.0
      %1212 = vmatpush2.msra.mxu0 0.0
      %1213 = vmatprep.subr.mxu0 0.0
      %1214 = vmatpush2.msra.mxu0 0.0
      %1215 = vmatprep.mubr.f32.mxu0 0.0
      %1216 = vmatmul.mubr.f32.gmra.mxu0 %v970
      %v1217 = vpop.f32.mrf.mxu0
      %v1218 = vadd.f32 %v1149, %v1217
      %v1219 = vpop.f32.mrf.mxu0
      %1220 = vmatprep.mubr.f32.mxu0 0.0
      %1221 = vmatmul.mubr.f32.gmra.mxu0 %v975
      %v1222 = vpop.f32.mrf.mxu0
      %v1223 = vadd.f32 %v1149, %v1222
      %v1224 = vpop.f32.mrf.mxu0
      %1225 = vmatprep.mubr.f32.mxu0 0.0
      %1226 = vmatmul.mubr.f32.gmra.mxu0 %v980
      %v1227 = vpop.f32.mrf.mxu0
      %v1228 = vadd.f32 %v1149, %v1227
      %v1229 = vpop.f32.mrf.mxu0
      %1230 = vmatprep.mubr.f32.mxu0 0.0
      %1231 = vmatmul.mubr.f32.gmra.mxu0 %v985
      %v1232 = vpop.f32.mrf.mxu0
      %v1233 = vadd.f32 %v1149, %v1232
      %v1234 = vpop.f32.mrf.mxu0
      %1235 = vmatprep.mubr.f32.mxu0 0.0
      %1236 = vmatmul.mubr.f32.gmra.mxu0 %v990
      %v1237 = vpop.f32.mrf.mxu0
      %v1238 = vadd.f32 %v1149, %v1237
      %v1239 = vpop.f32.mrf.mxu0
      %1240 = vmatprep.mubr.f32.mxu0 0.0
      %1241 = vmatmul.mubr.f32.gmra.mxu0 %v995
      %v1242 = vpop.f32.mrf.mxu0
      %v1243 = vadd.f32 %v1149, %v1242
      %v1244 = vpop.f32.mrf.mxu0
      %1245 = vmatprep.mubr.f32.mxu0 0.0
      %1246 = vmatmul.mubr.f32.gmra.mxu0 %v1000
      %v1247 = vpop.f32.mrf.mxu0
      %v1248 = vadd.f32 %v1149, %v1247
      %v1249 = vpop.f32.mrf.mxu0
      %1250 = vmatprep.mubr.f32.mxu0 0.0
      %1251 = vmatmul.mubr.f32.gmra.mxu0 %v1005
      %v1252 = vpop.f32.mrf.mxu0
      %v1253 = vadd.f32 %v1149, %v1252
      %v1254 = vpop.f32.mrf.mxu0
      %1255 = vmatprep.mubr.f32.mxu0 0.0
      %1256 = vmatmul.mubr.f32.gmra.mxu0 %v1010
      %v1257 = vpop.f32.mrf.mxu0
      %v1258 = vadd.f32 %v1149, %v1257
      %v1259 = vpop.f32.mrf.mxu0
      %1260 = vmatprep.mubr.f32.mxu0 0.0
      %1261 = vmatmul.mubr.f32.gmra.mxu0 %v1015
      %v1262 = vpop.f32.mrf.mxu0
      %v1263 = vadd.f32 %v1149, %v1262
      %v1264 = vpop.f32.mrf.mxu0
      %1265 = vmatprep.mubr.f32.mxu0 0.0
      %1266 = vmatmul.mubr.f32.gmra.mxu0 %v1020
      %v1267 = vpop.f32.mrf.mxu0
      %v1268 = vadd.f32 %v1149, %v1267
      %v1269 = vpop.f32.mrf.mxu0
      %1270 = vmatprep.mubr.f32.mxu0 0.0
      %1271 = vmatmul.mubr.f32.gmra.mxu0 %v1025
      %v1272 = vpop.f32.mrf.mxu0
      %v1273 = vadd.f32 %v1149, %v1272
      %v1274 = vpop.f32.mrf.mxu0
      %1275 = vmatprep.mubr.f32.mxu0 0.0
      %1276 = vmatmul.mubr.f32.gmra.mxu0 %v1030
      %v1277 = vpop.f32.mrf.mxu0
      %v1278 = vadd.f32 %v1149, %v1277
      %v1279 = vpop.f32.mrf.mxu0
      %1280 = vmatprep.mubr.f32.mxu0 0.0
      %1281 = vmatmul.mubr.f32.gmra.mxu0 %v1035
      %v1282 = vpop.f32.mrf.mxu0
      %v1283 = vadd.f32 %v1149, %v1282
      %v1284 = vpop.f32.mrf.mxu0
      %1285 = vmatprep.mubr.f32.mxu0 0.0
      %1286 = vmatmul.mubr.f32.gmra.mxu0 %v1040
      %v1287 = vpop.f32.mrf.mxu0
      %v1288 = vadd.f32 %v1149, %v1287
      %v1289 = vpop.f32.mrf.mxu0
      %1290 = vmatprep.mubr.f32.mxu0 0.0
      %1291 = vmatmul.mubr.f32.gmra.mxu0 %v1045
      %v1292 = vpop.f32.mrf.mxu0
      %v1293 = vadd.f32 %v1149, %v1292
      %v1294 = vpop.f32.mrf.mxu0
      %1295 = vmatprep.mubr.f32.mxu0 0.0
      %1296 = vmatmul.mubr.f32.gmra.mxu0 %v1050
      %v1297 = vpop.f32.mrf.mxu0
      %v1298 = vadd.f32 %v1149, %v1297
      %v1299 = vpop.f32.mrf.mxu0
      %1300 = vmatprep.mubr.f32.mxu0 0.0
      %1301 = vmatmul.mubr.f32.gmra.mxu0 %v1055
      %v1302 = vpop.f32.mrf.mxu0
      %v1303 = vadd.f32 %v1149, %v1302
      %v1304 = vpop.f32.mrf.mxu0
      %1305 = vmatprep.mubr.f32.mxu0 0.0
      %1306 = vmatmul.mubr.f32.gmra.mxu0 %v1060
      %v1307 = vpop.f32.mrf.mxu0
      %v1308 = vadd.f32 %v1149, %v1307
      %v1309 = vpop.f32.mrf.mxu0
      %1310 = vmatprep.mubr.f32.mxu0 0.0
      %1311 = vmatmul.mubr.f32.gmra.mxu0 %v1065
      %v1312 = vpop.f32.mrf.mxu0
      %v1313 = vadd.f32 %v1149, %v1312
      %v1314 = vpop.f32.mrf.mxu0
      %1315 = vmatprep.mubr.f32.mxu0 0.0
      %1316 = vmatmul.mubr.f32.gmra.mxu0 %v1070
      %v1317 = vpop.f32.mrf.mxu0
      %v1318 = vadd.f32 %v1149, %v1317
      %v1319 = vpop.f32.mrf.mxu0
      %1320 = vmatprep.mubr.f32.mxu0 0.0
      %1321 = vmatmul.mubr.f32.gmra.mxu0 %v1075
      %v1322 = vpop.f32.mrf.mxu0
      %v1323 = vadd.f32 %v1149, %v1322
      %v1324 = vpop.f32.mrf.mxu0
      %1325 = vmatprep.mubr.f32.mxu0 0.0
      %1326 = vmatmul.mubr.f32.gmra.mxu0 %v1080
      %v1327 = vpop.f32.mrf.mxu0
      %v1328 = vadd.f32 %v1149, %v1327
      %v1329 = vpop.f32.mrf.mxu0
      %1330 = vmatprep.mubr.f32.mxu0 0.0
      %1331 = vmatmul.mubr.f32.gmra.mxu0 %v1085
      %v1332 = vpop.f32.mrf.mxu0
      %v1333 = vadd.f32 %v1149, %v1332
      %v1334 = vpop.f32.mrf.mxu0
      %1335 = vmatprep.mubr.f32.mxu0 0.0
      %1336 = vmatmul.mubr.f32.gmra.mxu0 %v1090
      %v1337 = vpop.f32.mrf.mxu0
      %v1338 = vadd.f32 %v1149, %v1337
      %v1339 = vpop.f32.mrf.mxu0
      %1340 = vmatprep.mubr.f32.mxu0 0.0
      %1341 = vmatmul.mubr.f32.gmra.mxu0 %v1095
      %v1342 = vpop.f32.mrf.mxu0
      %v1343 = vadd.f32 %v1149, %v1342
      %v1344 = vpop.f32.mrf.mxu0
      %1345 = vmatprep.mubr.f32.mxu0 0.0
      %1346 = vmatmul.mubr.f32.gmra.mxu0 %v1100
      %v1347 = vpop.f32.mrf.mxu0
      %v1348 = vadd.f32 %v1149, %v1347
      %v1349 = vpop.f32.mrf.mxu0
      %1350 = vmatprep.mubr.f32.mxu0 0.0
      %1351 = vmatmul.mubr.f32.gmra.mxu0 %v1105
      %v1352 = vpop.f32.mrf.mxu0
      %v1353 = vadd.f32 %v1149, %v1352
      %v1354 = vpop.f32.mrf.mxu0
      %1355 = vmatprep.mubr.f32.mxu0 0.0
      %1356 = vmatmul.mubr.f32.gmra.mxu0 %v1110
      %v1357 = vpop.f32.mrf.mxu0
      %v1358 = vadd.f32 %v1149, %v1357
      %v1359 = vpop.f32.mrf.mxu0
      %1360 = vmatprep.mubr.f32.mxu0 0.0
      %1361 = vmatmul.mubr.f32.gmra.mxu0 %v1115
      %v1362 = vpop.f32.mrf.mxu0
      %v1363 = vadd.f32 %v1149, %v1362
      %v1364 = vpop.f32.mrf.mxu0
      %1365 = vmatprep.mubr.f32.mxu0 0.0
      %1366 = vmatmul.mubr.f32.gmra.mxu0 %v1120
      %v1367 = vpop.f32.mrf.mxu0
      %v1368 = vadd.f32 %v1149, %v1367
      %v1369 = vpop.f32.mrf.mxu0
      %1370 = vmatprep.mubr.f32.mxu0 0.0
      %1371 = vmatmul.mubr.f32.gmra.mxu0 %v1125
      %v1372 = vpop.f32.mrf.mxu0
      %v1373 = vadd.f32 %v1149, %v1372
      %v1374 = vpop.f32.mrf.mxu0
      %1375 = vdwg.mxu0
      %v1376 = vtanh.pop %v1218
      %v1377 = vtanh.pop %v1223
      %v1378 = vtanh.pop %v1228
      %v1379 = vtanh.pop %v1233
      %v1380 = vtanh.pop %v1238
      %v1381 = vtanh.pop %v1243
      %v1382 = vtanh.pop %v1248
      %v1383 = vtanh.pop %v1253
      %v1384 = vtanh.pop %v1258
      %v1385 = vtanh.pop %v1263
      %v1386 = vtanh.pop %v1268
      %v1387 = vtanh.pop %v1273
      %v1388 = vtanh.pop %v1278
      %v1389 = vtanh.pop %v1283
      %v1390 = vtanh.pop %v1288
      %v1391 = vtanh.pop %v1293
      %v1392 = vtanh.pop %v1298
      %v1393 = vtanh.pop %v1303
      %v1394 = vtanh.pop %v1308
      %v1395 = vtanh.pop %v1313
      %v1396 = vtanh.pop %v1318
      %v1397 = vtanh.pop %v1323
      %v1398 = vtanh.pop %v1328
      %v1399 = vtanh.pop %v1333
      %v1400 = vtanh.pop %v1338
      %v1401 = vtanh.pop %v1343
      %v1402 = vtanh.pop %v1348
      %v1403 = vtanh.pop %v1353
      %v1404 = vtanh.pop %v1358
      %v1405 = vtanh.pop %v1363
      %v1406 = vtanh.pop %v1368
      %v1407 = vtanh.pop %v1373
      %v1408 = vld [vmem:[%s5] sm:$0xff]
      %v1409 = vld [vmem:[%s5 + $0x8] sm:$0xff]
      %v1410 = vld [vmem:[%s5 + $0x10] sm:$0xff]
      %v1411 = vld [vmem:[%s5 + $0x18] sm:$0xff]
      %v1412 = vld [vmem:[%s5 + $0x20] sm:$0xff]
      %v1413 = vld [vmem:[%s5 + $0x28] sm:$0xff]
      %v1414 = vld [vmem:[%s5 + $0x30] sm:$0xff]
      %v1415 = vld [vmem:[%s5 + $0x38] sm:$0xff]
      %v1416 = vld [vmem:[%s5 + $0x40] sm:$0xff]
      %v1417 = vld [vmem:[%s5 + $0x48] sm:$0xff]
      %v1418 = vld [vmem:[%s5 + $0x50] sm:$0xff]
      %v1419 = vld [vmem:[%s5 + $0x58] sm:$0xff]
      %v1420 = vld [vmem:[%s5 + $0x60] sm:$0xff]
      %v1421 = vld [vmem:[%s5 + $0x68] sm:$0xff]
      %v1422 = vld [vmem:[%s5 + $0x70] sm:$0xff]
      %v1423 = vld [vmem:[%s5 + $0x78] sm:$0xff]
      %v1424 = vld [vmem:[%s6] sm:$0x1]
      %v1426 = vlaneseq
      %v1427 = vshrl.u32 %v1426, 7
      %v1428 = vsub.s32 0, %v1427
      %v1429 = vrot.slane %v1424, %v1428
      %1431 = vmatprep.subr.mxu0 0.0
      %1432 = vmatpush1.msra.mxu0 %v1423
      %1433 = vmatprep.subr.mxu0 0.0
      %1434 = vmatpush1.msra.mxu0 %v1422
      %1435 = vmatprep.subr.mxu0 0.0
      %1436 = vmatpush1.msra.mxu0 %v1421
      %1437 = vmatprep.subr.mxu0 0.0
      %1438 = vmatpush1.msra.mxu0 %v1420
      %1439 = vmatprep.subr.mxu0 0.0
      %1440 = vmatpush1.msra.mxu0 %v1419
      %1441 = vmatprep.subr.mxu0 0.0
      %1442 = vmatpush1.msra.mxu0 %v1418
      %1443 = vmatprep.subr.mxu0 0.0
      %1444 = vmatpush1.msra.mxu0 %v1417
      %1445 = vmatprep.subr.mxu0 0.0
      %1446 = vmatpush1.msra.mxu0 %v1416
      %1447 = vmatprep.subr.mxu0 0.0
      %1448 = vmatpush1.msra.mxu0 %v1415
      %1449 = vmatprep.subr.mxu0 0.0
      %1450 = vmatpush1.msra.mxu0 %v1414
      %1451 = vmatprep.subr.mxu0 0.0
      %1452 = vmatpush1.msra.mxu0 %v1413
      %1453 = vmatprep.subr.mxu0 0.0
      %1454 = vmatpush1.msra.mxu0 %v1412
      %1455 = vmatprep.subr.mxu0 0.0
      %1456 = vmatpush1.msra.mxu0 %v1411
      %1457 = vmatprep.subr.mxu0 0.0
      %1458 = vmatpush1.msra.mxu0 %v1410
      %1459 = vmatprep.subr.mxu0 0.0
      %1460 = vmatpush1.msra.mxu0 %v1409
      %1461 = vmatprep.subr.mxu0 0.0
      %1462 = vmatpush1.msra.mxu0 %v1408
      %1463 = vmatprep.subr.mxu0 0.0
      %1464 = vmatpush2.msra.mxu0 0.0
      %1465 = vmatprep.subr.mxu0 0.0
      %1466 = vmatpush2.msra.mxu0 0.0
      %1467 = vmatprep.subr.mxu0 0.0
      %1468 = vmatpush2.msra.mxu0 0.0
      %1469 = vmatprep.subr.mxu0 0.0
      %1470 = vmatpush2.msra.mxu0 0.0
      %1471 = vmatprep.subr.mxu0 0.0
      %1472 = vmatpush2.msra.mxu0 0.0
      %1473 = vmatprep.subr.mxu0 0.0
      %1474 = vmatpush2.msra.mxu0 0.0
      %1475 = vmatprep.subr.mxu0 0.0
      %1476 = vmatpush2.msra.mxu0 0.0
      %1477 = vmatprep.subr.mxu0 0.0
      %1478 = vmatpush2.msra.mxu0 0.0
      %1479 = vmatprep.subr.mxu0 0.0
      %1480 = vmatpush2.msra.mxu0 0.0
      %1481 = vmatprep.subr.mxu0 0.0
      %1482 = vmatpush2.msra.mxu0 0.0
      %1483 = vmatprep.subr.mxu0 0.0
      %1484 = vmatpush2.msra.mxu0 0.0
      %1485 = vmatprep.subr.mxu0 0.0
      %1486 = vmatpush2.msra.mxu0 0.0
      %1487 = vmatprep.subr.mxu0 0.0
      %1488 = vmatpush2.msra.mxu0 0.0
      %1489 = vmatprep.subr.mxu0 0.0
      %1490 = vmatpush2.msra.mxu0 0.0
      %1491 = vmatprep.subr.mxu0 0.0
      %1492 = vmatpush2.msra.mxu0 0.0
      %1493 = vmatprep.subr.mxu0 0.0
      %1494 = vmatpush2.msra.mxu0 0.0
      %1495 = vmatprep.mubr.f32.mxu0 0.0
      %1496 = vmatmul.mubr.f32.gmra.mxu0 %v1376
      %v1497 = vpop.f32.mrf.mxu0
      %v1498 = vadd.f32 %v1429, %v1497
      %v1499 = vpop.f32.mrf.mxu0
      %1500 = vmatprep.mubr.f32.mxu0 0.0
      %1501 = vmatmul.mubr.f32.gmra.mxu0 %v1377
      %v1502 = vpop.f32.mrf.mxu0
      %v1503 = vadd.f32 %v1429, %v1502
      %v1504 = vpop.f32.mrf.mxu0
      %1505 = vmatprep.mubr.f32.mxu0 0.0
      %1506 = vmatmul.mubr.f32.gmra.mxu0 %v1378
      %v1507 = vpop.f32.mrf.mxu0
      %v1508 = vadd.f32 %v1429, %v1507
      %v1509 = vpop.f32.mrf.mxu0
      %1510 = vmatprep.mubr.f32.mxu0 0.0
      %1511 = vmatmul.mubr.f32.gmra.mxu0 %v1379
      %v1512 = vpop.f32.mrf.mxu0
      %v1513 = vadd.f32 %v1429, %v1512
      %v1514 = vpop.f32.mrf.mxu0
      %1515 = vmatprep.mubr.f32.mxu0 0.0
      %1516 = vmatmul.mubr.f32.gmra.mxu0 %v1380
      %v1517 = vpop.f32.mrf.mxu0
      %v1518 = vadd.f32 %v1429, %v1517
      %v1519 = vpop.f32.mrf.mxu0
      %1520 = vmatprep.mubr.f32.mxu0 0.0
      %1521 = vmatmul.mubr.f32.gmra.mxu0 %v1381
      %v1522 = vpop.f32.mrf.mxu0
      %v1523 = vadd.f32 %v1429, %v1522
      %v1524 = vpop.f32.mrf.mxu0
      %1525 = vmatprep.mubr.f32.mxu0 0.0
      %1526 = vmatmul.mubr.f32.gmra.mxu0 %v1382
      %v1527 = vpop.f32.mrf.mxu0
      %v1528 = vadd.f32 %v1429, %v1527
      %v1529 = vpop.f32.mrf.mxu0
      %1530 = vmatprep.mubr.f32.mxu0 0.0
      %1531 = vmatmul.mubr.f32.gmra.mxu0 %v1383
      %v1532 = vpop.f32.mrf.mxu0
      %v1533 = vadd.f32 %v1429, %v1532
      %v1534 = vpop.f32.mrf.mxu0
      %1535 = vmatprep.mubr.f32.mxu0 0.0
      %1536 = vmatmul.mubr.f32.gmra.mxu0 %v1384
      %v1537 = vpop.f32.mrf.mxu0
      %v1538 = vadd.f32 %v1429, %v1537
      %v1539 = vpop.f32.mrf.mxu0
      %1540 = vmatprep.mubr.f32.mxu0 0.0
      %1541 = vmatmul.mubr.f32.gmra.mxu0 %v1385
      %v1542 = vpop.f32.mrf.mxu0
      %v1543 = vadd.f32 %v1429, %v1542
      %v1544 = vpop.f32.mrf.mxu0
      %1545 = vmatprep.mubr.f32.mxu0 0.0
      %1546 = vmatmul.mubr.f32.gmra.mxu0 %v1386
      %v1547 = vpop.f32.mrf.mxu0
      %v1548 = vadd.f32 %v1429, %v1547
      %v1549 = vpop.f32.mrf.mxu0
      %1550 = vmatprep.mubr.f32.mxu0 0.0
      %1551 = vmatmul.mubr.f32.gmra.mxu0 %v1387
      %v1552 = vpop.f32.mrf.mxu0
      %v1553 = vadd.f32 %v1429, %v1552
      %v1554 = vpop.f32.mrf.mxu0
      %1555 = vmatprep.mubr.f32.mxu0 0.0
      %1556 = vmatmul.mubr.f32.gmra.mxu0 %v1388
      %v1557 = vpop.f32.mrf.mxu0
      %v1558 = vadd.f32 %v1429, %v1557
      %v1559 = vpop.f32.mrf.mxu0
      %1560 = vmatprep.mubr.f32.mxu0 0.0
      %1561 = vmatmul.mubr.f32.gmra.mxu0 %v1389
      %v1562 = vpop.f32.mrf.mxu0
      %v1563 = vadd.f32 %v1429, %v1562
      %v1564 = vpop.f32.mrf.mxu0
      %1565 = vmatprep.mubr.f32.mxu0 0.0
      %1566 = vmatmul.mubr.f32.gmra.mxu0 %v1390
      %v1567 = vpop.f32.mrf.mxu0
      %v1568 = vadd.f32 %v1429, %v1567
      %v1569 = vpop.f32.mrf.mxu0
      %1570 = vmatprep.mubr.f32.mxu0 0.0
      %1571 = vmatmul.mubr.f32.gmra.mxu0 %v1391
      %v1572 = vpop.f32.mrf.mxu0
      %v1573 = vadd.f32 %v1429, %v1572
      %v1574 = vpop.f32.mrf.mxu0
      %1575 = vmatprep.mubr.f32.mxu0 0.0
      %1576 = vmatmul.mubr.f32.gmra.mxu0 %v1392
      %v1577 = vpop.f32.mrf.mxu0
      %v1578 = vadd.f32 %v1429, %v1577
      %v1579 = vpop.f32.mrf.mxu0
      %1580 = vmatprep.mubr.f32.mxu0 0.0
      %1581 = vmatmul.mubr.f32.gmra.mxu0 %v1393
      %v1582 = vpop.f32.mrf.mxu0
      %v1583 = vadd.f32 %v1429, %v1582
      %v1584 = vpop.f32.mrf.mxu0
      %1585 = vmatprep.mubr.f32.mxu0 0.0
      %1586 = vmatmul.mubr.f32.gmra.mxu0 %v1394
      %v1587 = vpop.f32.mrf.mxu0
      %v1588 = vadd.f32 %v1429, %v1587
      %v1589 = vpop.f32.mrf.mxu0
      %1590 = vmatprep.mubr.f32.mxu0 0.0
      %1591 = vmatmul.mubr.f32.gmra.mxu0 %v1395
      %v1592 = vpop.f32.mrf.mxu0
      %v1593 = vadd.f32 %v1429, %v1592
      %v1594 = vpop.f32.mrf.mxu0
      %1595 = vmatprep.mubr.f32.mxu0 0.0
      %1596 = vmatmul.mubr.f32.gmra.mxu0 %v1396
      %v1597 = vpop.f32.mrf.mxu0
      %v1598 = vadd.f32 %v1429, %v1597
      %v1599 = vpop.f32.mrf.mxu0
      %1600 = vmatprep.mubr.f32.mxu0 0.0
      %1601 = vmatmul.mubr.f32.gmra.mxu0 %v1397
      %v1602 = vpop.f32.mrf.mxu0
      %v1603 = vadd.f32 %v1429, %v1602
      %v1604 = vpop.f32.mrf.mxu0
      %1605 = vmatprep.mubr.f32.mxu0 0.0
      %1606 = vmatmul.mubr.f32.gmra.mxu0 %v1398
      %v1607 = vpop.f32.mrf.mxu0
      %v1608 = vadd.f32 %v1429, %v1607
      %v1609 = vpop.f32.mrf.mxu0
      %1610 = vmatprep.mubr.f32.mxu0 0.0
      %1611 = vmatmul.mubr.f32.gmra.mxu0 %v1399
      %v1612 = vpop.f32.mrf.mxu0
      %v1613 = vadd.f32 %v1429, %v1612
      %v1614 = vpop.f32.mrf.mxu0
      %1615 = vmatprep.mubr.f32.mxu0 0.0
      %1616 = vmatmul.mubr.f32.gmra.mxu0 %v1400
      %v1617 = vpop.f32.mrf.mxu0
      %v1618 = vadd.f32 %v1429, %v1617
      %v1619 = vpop.f32.mrf.mxu0
      %1620 = vmatprep.mubr.f32.mxu0 0.0
      %1621 = vmatmul.mubr.f32.gmra.mxu0 %v1401
      %v1622 = vpop.f32.mrf.mxu0
      %v1623 = vadd.f32 %v1429, %v1622
      %v1624 = vpop.f32.mrf.mxu0
      %1625 = vmatprep.mubr.f32.mxu0 0.0
      %1626 = vmatmul.mubr.f32.gmra.mxu0 %v1402
      %v1627 = vpop.f32.mrf.mxu0
      %v1628 = vadd.f32 %v1429, %v1627
      %v1629 = vpop.f32.mrf.mxu0
      %1630 = vmatprep.mubr.f32.mxu0 0.0
      %1631 = vmatmul.mubr.f32.gmra.mxu0 %v1403
      %v1632 = vpop.f32.mrf.mxu0
      %v1633 = vadd.f32 %v1429, %v1632
      %v1634 = vpop.f32.mrf.mxu0
      %1635 = vmatprep.mubr.f32.mxu0 0.0
      %1636 = vmatmul.mubr.f32.gmra.mxu0 %v1404
      %v1637 = vpop.f32.mrf.mxu0
      %v1638 = vadd.f32 %v1429, %v1637
      %v1639 = vpop.f32.mrf.mxu0
      %1640 = vmatprep.mubr.f32.mxu0 0.0
      %1641 = vmatmul.mubr.f32.gmra.mxu0 %v1405
      %v1642 = vpop.f32.mrf.mxu0
      %v1643 = vadd.f32 %v1429, %v1642
      %v1644 = vpop.f32.mrf.mxu0
      %1645 = vmatprep.mubr.f32.mxu0 0.0
      %1646 = vmatmul.mubr.f32.gmra.mxu0 %v1406
      %v1647 = vpop.f32.mrf.mxu0
      %v1648 = vadd.f32 %v1429, %v1647
      %v1649 = vpop.f32.mrf.mxu0
      %1650 = vmatprep.mubr.f32.mxu0 0.0
      %1651 = vmatmul.mubr.f32.gmra.mxu0 %v1407
      %v1652 = vpop.f32.mrf.mxu0
      %v1653 = vadd.f32 %v1429, %v1652
      %v1654 = vpop.f32.mrf.mxu0
      %1655 = vdwg.mxu0
      %v1656 = vtanh.pop %v1498
      %v1657 = vtanh.pop %v1503
      %v1658 = vtanh.pop %v1508
      %v1659 = vtanh.pop %v1513
      %v1660 = vtanh.pop %v1518
      %v1661 = vtanh.pop %v1523
      %v1662 = vtanh.pop %v1528
      %v1663 = vtanh.pop %v1533
      %v1664 = vtanh.pop %v1538
      %v1665 = vtanh.pop %v1543
      %v1666 = vtanh.pop %v1548
      %v1667 = vtanh.pop %v1553
      %v1668 = vtanh.pop %v1558
      %v1669 = vtanh.pop %v1563
      %v1670 = vtanh.pop %v1568
      %v1671 = vtanh.pop %v1573
      %v1672 = vtanh.pop %v1578
      %v1673 = vtanh.pop %v1583
      %v1674 = vtanh.pop %v1588
      %v1675 = vtanh.pop %v1593
      %v1676 = vtanh.pop %v1598
      %v1677 = vtanh.pop %v1603
      %v1678 = vtanh.pop %v1608
      %v1679 = vtanh.pop %v1613
      %v1680 = vtanh.pop %v1618
      %v1681 = vtanh.pop %v1623
      %v1682 = vtanh.pop %v1628
      %v1683 = vtanh.pop %v1633
      %v1684 = vtanh.pop %v1638
      %v1685 = vtanh.pop %v1643
      %v1686 = vtanh.pop %v1648
      %v1687 = vtanh.pop %v1653
      %v1688 = vadd.f32 %v1656, %v970
      %v1689 = vadd.f32 %v1657, %v975
      %v1690 = vadd.f32 %v1658, %v980
      %v1691 = vadd.f32 %v1659, %v985
      %v1692 = vadd.f32 %v1660, %v990
      %v1693 = vadd.f32 %v1661, %v995
      %v1694 = vadd.f32 %v1662, %v1000
      %v1695 = vadd.f32 %v1663, %v1005
      %v1696 = vadd.f32 %v1664, %v1010
      %v1697 = vadd.f32 %v1665, %v1015
      %v1698 = vadd.f32 %v1666, %v1020
      %v1699 = vadd.f32 %v1667, %v1025
      %v1700 = vadd.f32 %v1668, %v1030
      %v1701 = vadd.f32 %v1669, %v1035
      %v1702 = vadd.f32 %v1670, %v1040
      %v1703 = vadd.f32 %v1671, %v1045
      %v1704 = vadd.f32 %v1672, %v1050
      %v1705 = vadd.f32 %v1673, %v1055
      %v1706 = vadd.f32 %v1674, %v1060
      %v1707 = vadd.f32 %v1675, %v1065
      %v1708 = vadd.f32 %v1676, %v1070
      %v1709 = vadd.f32 %v1677, %v1075
      %v1710 = vadd.f32 %v1678, %v1080
      %v1711 = vadd.f32 %v1679, %v1085
      %v1712 = vadd.f32 %v1680, %v1090
      %v1713 = vadd.f32 %v1681, %v1095
      %v1714 = vadd.f32 %v1682, %v1100
      %v1715 = vadd.f32 %v1683, %v1105
      %v1716 = vadd.f32 %v1684, %v1110
      %v1717 = vadd.f32 %v1685, %v1115
      %v1718 = vadd.f32 %v1686, %v1120
      %v1719 = vadd.f32 %v1687, %v1125
      %s1720 = scalar_lea.vmem %s3, 128
      %v1721 = vld [vmem:[%s1720] sm:$0xff]
      %v1722 = vld [vmem:[%s1720 + $0x8] sm:$0xff]
      %v1723 = vld [vmem:[%s1720 + $0x10] sm:$0xff]
      %v1724 = vld [vmem:[%s1720 + $0x18] sm:$0xff]
      %v1725 = vld [vmem:[%s1720 + $0x20] sm:$0xff]
      %v1726 = vld [vmem:[%s1720 + $0x28] sm:$0xff]
      %v1727 = vld [vmem:[%s1720 + $0x30] sm:$0xff]
      %v1728 = vld [vmem:[%s1720 + $0x38] sm:$0xff]
      %v1729 = vld [vmem:[%s1720 + $0x40] sm:$0xff]
      %v1730 = vld [vmem:[%s1720 + $0x48] sm:$0xff]
      %v1731 = vld [vmem:[%s1720 + $0x50] sm:$0xff]
      %v1732 = vld [vmem:[%s1720 + $0x58] sm:$0xff]
      %v1733 = vld [vmem:[%s1720 + $0x60] sm:$0xff]
      %v1734 = vld [vmem:[%s1720 + $0x68] sm:$0xff]
      %v1735 = vld [vmem:[%s1720 + $0x70] sm:$0xff]
      %v1736 = vld [vmem:[%s1720 + $0x78] sm:$0xff]
      %s1737 = scalar_lea.vmem %s4, 1
      %v1738 = vld [vmem:[%s1737] sm:$0x1]
      %v1740 = vlaneseq
      %v1741 = vshrl.u32 %v1740, 7
      %v1742 = vsub.s32 0, %v1741
      %v1743 = vrot.slane %v1738, %v1742
      %1745 = vmatprep.subr.mxu0 0.0
      %1746 = vmatpush1.msra.mxu0 %v1736
      %1747 = vmatprep.subr.mxu0 0.0
      %1748 = vmatpush1.msra.mxu0 %v1735
      %1749 = vmatprep.subr.mxu0 0.0
      %1750 = vmatpush1.msra.mxu0 %v1734
      %1751 = vmatprep.subr.mxu0 0.0
      %1752 = vmatpush1.msra.mxu0 %v1733
      %1753 = vmatprep.subr.mxu0 0.0
      %1754 = vmatpush1.msra.mxu0 %v1732
      %1755 = vmatprep.subr.mxu0 0.0
      %1756 = vmatpush1.msra.mxu0 %v1731
      %1757 = vmatprep.subr.mxu0 0.0
      %1758 = vmatpush1.msra.mxu0 %v1730
      %1759 = vmatprep.subr.mxu0 0.0
      %1760 = vmatpush1.msra.mxu0 %v1729
      %1761 = vmatprep.subr.mxu0 0.0
      %1762 = vmatpush1.msra.mxu0 %v1728
      %1763 = vmatprep.subr.mxu0 0.0
      %1764 = vmatpush1.msra.mxu0 %v1727
      %1765 = vmatprep.subr.mxu0 0.0
      %1766 = vmatpush1.msra.mxu0 %v1726
      %1767 = vmatprep.subr.mxu0 0.0
      %1768 = vmatpush1.msra.mxu0 %v1725
      %1769 = vmatprep.subr.mxu0 0.0
      %1770 = vmatpush1.msra.mxu0 %v1724
      %1771 = vmatprep.subr.mxu0 0.0
      %1772 = vmatpush1.msra.mxu0 %v1723
      %1773 = vmatprep.subr.mxu0 0.0
      %1774 = vmatpush1.msra.mxu0 %v1722
      %1775 = vmatprep.subr.mxu0 0.0
      %1776 = vmatpush1.msra.mxu0 %v1721
      %1777 = vmatprep.subr.mxu0 0.0
      %1778 = vmatpush2.msra.mxu0 0.0
      %1779 = vmatprep.subr.mxu0 0.0
      %1780 = vmatpush2.msra.mxu0 0.0
      %1781 = vmatprep.subr.mxu0 0.0
      %1782 = vmatpush2.msra.mxu0 0.0
      %1783 = vmatprep.subr.mxu0 0.0
      %1784 = vmatpush2.msra.mxu0 0.0
      %1785 = vmatprep.subr.mxu0 0.0
      %1786 = vmatpush2.msra.mxu0 0.0
      %1787 = vmatprep.subr.mxu0 0.0
      %1788 = vmatpush2.msra.mxu0 0.0
      %1789 = vmatprep.subr.mxu0 0.0
      %1790 = vmatpush2.msra.mxu0 0.0
      %1791 = vmatprep.subr.mxu0 0.0
      %1792 = vmatpush2.msra.mxu0 0.0
      %1793 = vmatprep.subr.mxu0 0.0
      %1794 = vmatpush2.msra.mxu0 0.0
      %1795 = vmatprep.subr.mxu0 0.0
      %1796 = vmatpush2.msra.mxu0 0.0
      %1797 = vmatprep.subr.mxu0 0.0
      %1798 = vmatpush2.msra.mxu0 0.0
      %1799 = vmatprep.subr.mxu0 0.0
      %1800 = vmatpush2.msra.mxu0 0.0
      %1801 = vmatprep.subr.mxu0 0.0
      %1802 = vmatpush2.msra.mxu0 0.0
      %1803 = vmatprep.subr.mxu0 0.0
      %1804 = vmatpush2.msra.mxu0 0.0
      %1805 = vmatprep.subr.mxu0 0.0
      %1806 = vmatpush2.msra.mxu0 0.0
      %1807 = vmatprep.subr.mxu0 0.0
      %1808 = vmatpush2.msra.mxu0 0.0
      %1809 = vmatprep.mubr.f32.mxu0 0.0
      %1810 = vmatmul.mubr.f32.gmra.mxu0 %v1688
      %v1811 = vpop.f32.mrf.mxu0
      %v1812 = vadd.f32 %v1743, %v1811
      %v1813 = vpop.f32.mrf.mxu0
      %1814 = vmatprep.mubr.f32.mxu0 0.0
      %1815 = vmatmul.mubr.f32.gmra.mxu0 %v1689
      %v1816 = vpop.f32.mrf.mxu0
      %v1817 = vadd.f32 %v1743, %v1816
      %v1818 = vpop.f32.mrf.mxu0
      %1819 = vmatprep.mubr.f32.mxu0 0.0
      %1820 = vmatmul.mubr.f32.gmra.mxu0 %v1690
      %v1821 = vpop.f32.mrf.mxu0
      %v1822 = vadd.f32 %v1743, %v1821
      %v1823 = vpop.f32.mrf.mxu0
      %1824 = vmatprep.mubr.f32.mxu0 0.0
      %1825 = vmatmul.mubr.f32.gmra.mxu0 %v1691
      %v1826 = vpop.f32.mrf.mxu0
      %v1827 = vadd.f32 %v1743, %v1826
      %v1828 = vpop.f32.mrf.mxu0
      %1829 = vmatprep.mubr.f32.mxu0 0.0
      %1830 = vmatmul.mubr.f32.gmra.mxu0 %v1692
      %v1831 = vpop.f32.mrf.mxu0
      %v1832 = vadd.f32 %v1743, %v1831
      %v1833 = vpop.f32.mrf.mxu0
      %1834 = vmatprep.mubr.f32.mxu0 0.0
      %1835 = vmatmul.mubr.f32.gmra.mxu0 %v1693
      %v1836 = vpop.f32.mrf.mxu0
      %v1837 = vadd.f32 %v1743, %v1836
      %v1838 = vpop.f32.mrf.mxu0
      %1839 = vmatprep.mubr.f32.mxu0 0.0
      %1840 = vmatmul.mubr.f32.gmra.mxu0 %v1694
      %v1841 = vpop.f32.mrf.mxu0
      %v1842 = vadd.f32 %v1743, %v1841
      %v1843 = vpop.f32.mrf.mxu0
      %1844 = vmatprep.mubr.f32.mxu0 0.0
      %1845 = vmatmul.mubr.f32.gmra.mxu0 %v1695
      %v1846 = vpop.f32.mrf.mxu0
      %v1847 = vadd.f32 %v1743, %v1846
      %v1848 = vpop.f32.mrf.mxu0
      %1849 = vmatprep.mubr.f32.mxu0 0.0
      %1850 = vmatmul.mubr.f32.gmra.mxu0 %v1696
      %v1851 = vpop.f32.mrf.mxu0
      %v1852 = vadd.f32 %v1743, %v1851
      %v1853 = vpop.f32.mrf.mxu0
      %1854 = vmatprep.mubr.f32.mxu0 0.0
      %1855 = vmatmul.mubr.f32.gmra.mxu0 %v1697
      %v1856 = vpop.f32.mrf.mxu0
      %v1857 = vadd.f32 %v1743, %v1856
      %v1858 = vpop.f32.mrf.mxu0
      %1859 = vmatprep.mubr.f32.mxu0 0.0
      %1860 = vmatmul.mubr.f32.gmra.mxu0 %v1698
      %v1861 = vpop.f32.mrf.mxu0
      %v1862 = vadd.f32 %v1743, %v1861
      %v1863 = vpop.f32.mrf.mxu0
      %1864 = vmatprep.mubr.f32.mxu0 0.0
      %1865 = vmatmul.mubr.f32.gmra.mxu0 %v1699
      %v1866 = vpop.f32.mrf.mxu0
      %v1867 = vadd.f32 %v1743, %v1866
      %v1868 = vpop.f32.mrf.mxu0
      %1869 = vmatprep.mubr.f32.mxu0 0.0
      %1870 = vmatmul.mubr.f32.gmra.mxu0 %v1700
      %v1871 = vpop.f32.mrf.mxu0
      %v1872 = vadd.f32 %v1743, %v1871
      %v1873 = vpop.f32.mrf.mxu0
      %1874 = vmatprep.mubr.f32.mxu0 0.0
      %1875 = vmatmul.mubr.f32.gmra.mxu0 %v1701
      %v1876 = vpop.f32.mrf.mxu0
      %v1877 = vadd.f32 %v1743, %v1876
      %v1878 = vpop.f32.mrf.mxu0
      %1879 = vmatprep.mubr.f32.mxu0 0.0
      %1880 = vmatmul.mubr.f32.gmra.mxu0 %v1702
      %v1881 = vpop.f32.mrf.mxu0
      %v1882 = vadd.f32 %v1743, %v1881
      %v1883 = vpop.f32.mrf.mxu0
      %1884 = vmatprep.mubr.f32.mxu0 0.0
      %1885 = vmatmul.mubr.f32.gmra.mxu0 %v1703
      %v1886 = vpop.f32.mrf.mxu0
      %v1887 = vadd.f32 %v1743, %v1886
      %v1888 = vpop.f32.mrf.mxu0
      %1889 = vmatprep.mubr.f32.mxu0 0.0
      %1890 = vmatmul.mubr.f32.gmra.mxu0 %v1704
      %v1891 = vpop.f32.mrf.mxu0
      %v1892 = vadd.f32 %v1743, %v1891
      %v1893 = vpop.f32.mrf.mxu0
      %1894 = vmatprep.mubr.f32.mxu0 0.0
      %1895 = vmatmul.mubr.f32.gmra.mxu0 %v1705
      %v1896 = vpop.f32.mrf.mxu0
      %v1897 = vadd.f32 %v1743, %v1896
      %v1898 = vpop.f32.mrf.mxu0
      %1899 = vmatprep.mubr.f32.mxu0 0.0
      %1900 = vmatmul.mubr.f32.gmra.mxu0 %v1706
      %v1901 = vpop.f32.mrf.mxu0
      %v1902 = vadd.f32 %v1743, %v1901
      %v1903 = vpop.f32.mrf.mxu0
      %1904 = vmatprep.mubr.f32.mxu0 0.0
      %1905 = vmatmul.mubr.f32.gmra.mxu0 %v1707
      %v1906 = vpop.f32.mrf.mxu0
      %v1907 = vadd.f32 %v1743, %v1906
      %v1908 = vpop.f32.mrf.mxu0
      %1909 = vmatprep.mubr.f32.mxu0 0.0
      %1910 = vmatmul.mubr.f32.gmra.mxu0 %v1708
      %v1911 = vpop.f32.mrf.mxu0
      %v1912 = vadd.f32 %v1743, %v1911
      %v1913 = vpop.f32.mrf.mxu0
      %1914 = vmatprep.mubr.f32.mxu0 0.0
      %1915 = vmatmul.mubr.f32.gmra.mxu0 %v1709
      %v1916 = vpop.f32.mrf.mxu0
      %v1917 = vadd.f32 %v1743, %v1916
      %v1918 = vpop.f32.mrf.mxu0
      %1919 = vmatprep.mubr.f32.mxu0 0.0
      %1920 = vmatmul.mubr.f32.gmra.mxu0 %v1710
      %v1921 = vpop.f32.mrf.mxu0
      %v1922 = vadd.f32 %v1743, %v1921
      %v1923 = vpop.f32.mrf.mxu0
      %1924 = vmatprep.mubr.f32.mxu0 0.0
      %1925 = vmatmul.mubr.f32.gmra.mxu0 %v1711
      %v1926 = vpop.f32.mrf.mxu0
      %v1927 = vadd.f32 %v1743, %v1926
      %v1928 = vpop.f32.mrf.mxu0
      %1929 = vmatprep.mubr.f32.mxu0 0.0
      %1930 = vmatmul.mubr.f32.gmra.mxu0 %v1712
      %v1931 = vpop.f32.mrf.mxu0
      %v1932 = vadd.f32 %v1743, %v1931
      %v1933 = vpop.f32.mrf.mxu0
      %1934 = vmatprep.mubr.f32.mxu0 0.0
      %1935 = vmatmul.mubr.f32.gmra.mxu0 %v1713
      %v1936 = vpop.f32.mrf.mxu0
      %v1937 = vadd.f32 %v1743, %v1936
      %v1938 = vpop.f32.mrf.mxu0
      %1939 = vmatprep.mubr.f32.mxu0 0.0
      %1940 = vmatmul.mubr.f32.gmra.mxu0 %v1714
      %v1941 = vpop.f32.mrf.mxu0
      %v1942 = vadd.f32 %v1743, %v1941
      %v1943 = vpop.f32.mrf.mxu0
      %1944 = vmatprep.mubr.f32.mxu0 0.0
      %1945 = vmatmul.mubr.f32.gmra.mxu0 %v1715
      %v1946 = vpop.f32.mrf.mxu0
      %v1947 = vadd.f32 %v1743, %v1946
      %v1948 = vpop.f32.mrf.mxu0
      %1949 = vmatprep.mubr.f32.mxu0 0.0
      %1950 = vmatmul.mubr.f32.gmra.mxu0 %v1716
      %v1951 = vpop.f32.mrf.mxu0
      %v1952 = vadd.f32 %v1743, %v1951
      %v1953 = vpop.f32.mrf.mxu0
      %1954 = vmatprep.mubr.f32.mxu0 0.0
      %1955 = vmatmul.mubr.f32.gmra.mxu0 %v1717
      %v1956 = vpop.f32.mrf.mxu0
      %v1957 = vadd.f32 %v1743, %v1956
      %v1958 = vpop.f32.mrf.mxu0
      %1959 = vmatprep.mubr.f32.mxu0 0.0
      %1960 = vmatmul.mubr.f32.gmra.mxu0 %v1718
      %v1961 = vpop.f32.mrf.mxu0
      %v1962 = vadd.f32 %v1743, %v1961
      %v1963 = vpop.f32.mrf.mxu0
      %1964 = vmatprep.mubr.f32.mxu0 0.0
      %1965 = vmatmul.mubr.f32.gmra.mxu0 %v1719
      %v1966 = vpop.f32.mrf.mxu0
      %v1967 = vadd.f32 %v1743, %v1966
      %v1968 = vpop.f32.mrf.mxu0
      %1969 = vdwg.mxu0
      %v1970 = vtanh.pop %v1812
      %v1971 = vtanh.pop %v1817
      %v1972 = vtanh.pop %v1822
      %v1973 = vtanh.pop %v1827
      %v1974 = vtanh.pop %v1832
      %v1975 = vtanh.pop %v1837
      %v1976 = vtanh.pop %v1842
      %v1977 = vtanh.pop %v1847
      %v1978 = vtanh.pop %v1852
      %v1979 = vtanh.pop %v1857
      %v1980 = vtanh.pop %v1862
      %v1981 = vtanh.pop %v1867
      %v1982 = vtanh.pop %v1872
      %v1983 = vtanh.pop %v1877
      %v1984 = vtanh.pop %v1882
      %v1985 = vtanh.pop %v1887
      %v1986 = vtanh.pop %v1892
      %v1987 = vtanh.pop %v1897
      %v1988 = vtanh.pop %v1902
      %v1989 = vtanh.pop %v1907
      %v1990 = vtanh.pop %v1912
      %v1991 = vtanh.pop %v1917
      %v1992 = vtanh.pop %v1922
      %v1993 = vtanh.pop %v1927
      %v1994 = vtanh.pop %v1932
      %v1995 = vtanh.pop %v1937
      %v1996 = vtanh.pop %v1942
      %v1997 = vtanh.pop %v1947
      %v1998 = vtanh.pop %v1952
      %v1999 = vtanh.pop %v1957
      %v2000 = vtanh.pop %v1962
      %v2001 = vtanh.pop %v1967
      %s2002 = scalar_lea.vmem %s5, 128
      %v2003 = vld [vmem:[%s2002] sm:$0xff]
      %v2004 = vld [vmem:[%s2002 + $0x8] sm:$0xff]
      %v2005 = vld [vmem:[%s2002 + $0x10] sm:$0xff]
      %v2006 = vld [vmem:[%s2002 + $0x18] sm:$0xff]
      %v2007 = vld [vmem:[%s2002 + $0x20] sm:$0xff]
      %v2008 = vld [vmem:[%s2002 + $0x28] sm:$0xff]
      %v2009 = vld [vmem:[%s2002 + $0x30] sm:$0xff]
      %v2010 = vld [vmem:[%s2002 + $0x38] sm:$0xff]
      %v2011 = vld [vmem:[%s2002 + $0x40] sm:$0xff]
      %v2012 = vld [vmem:[%s2002 + $0x48] sm:$0xff]
      %v2013 = vld [vmem:[%s2002 + $0x50] sm:$0xff]
      %v2014 = vld [vmem:[%s2002 + $0x58] sm:$0xff]
      %v2015 = vld [vmem:[%s2002 + $0x60] sm:$0xff]
      %v2016 = vld [vmem:[%s2002 + $0x68] sm:$0xff]
      %v2017 = vld [vmem:[%s2002 + $0x70] sm:$0xff]
      %v2018 = vld [vmem:[%s2002 + $0x78] sm:$0xff]
      %s2019 = scalar_lea.vmem %s6, 1
      %v2020 = vld [vmem:[%s2019] sm:$0x1]
      %v2022 = vlaneseq
      %v2023 = vshrl.u32 %v2022, 7
      %v2024 = vsub.s32 0, %v2023
      %v2025 = vrot.slane %v2020, %v2024
      %2027 = vmatprep.subr.mxu0 0.0
      %2028 = vmatpush1.msra.mxu0 %v2018
      %2029 = vmatprep.subr.mxu0 0.0
      %2030 = vmatpush1.msra.mxu0 %v2017
      %2031 = vmatprep.subr.mxu0 0.0
      %2032 = vmatpush1.msra.mxu0 %v2016
      %2033 = vmatprep.subr.mxu0 0.0
      %2034 = vmatpush1.msra.mxu0 %v2015
      %2035 = vmatprep.subr.mxu0 0.0
      %2036 = vmatpush1.msra.mxu0 %v2014
      %2037 = vmatprep.subr.mxu0 0.0
      %2038 = vmatpush1.msra.mxu0 %v2013
      %2039 = vmatprep.subr.mxu0 0.0
      %2040 = vmatpush1.msra.mxu0 %v2012
      %2041 = vmatprep.subr.mxu0 0.0
      %2042 = vmatpush1.msra.mxu0 %v2011
      %2043 = vmatprep.subr.mxu0 0.0
      %2044 = vmatpush1.msra.mxu0 %v2010
      %2045 = vmatprep.subr.mxu0 0.0
      %2046 = vmatpush1.msra.mxu0 %v2009
      %2047 = vmatprep.subr.mxu0 0.0
      %2048 = vmatpush1.msra.mxu0 %v2008
      %2049 = vmatprep.subr.mxu0 0.0
      %2050 = vmatpush1.msra.mxu0 %v2007
      %2051 = vmatprep.subr.mxu0 0.0
      %2052 = vmatpush1.msra.mxu0 %v2006
      %2053 = vmatprep.subr.mxu0 0.0
      %2054 = vmatpush1.msra.mxu0 %v2005
      %2055 = vmatprep.subr.mxu0 0.0
      %2056 = vmatpush1.msra.mxu0 %v2004
      %2057 = vmatprep.subr.mxu0 0.0
      %2058 = vmatpush1.msra.mxu0 %v2003
      %2059 = vmatprep.subr.mxu0 0.0
      %2060 = vmatpush2.msra.mxu0 0.0
      %2061 = vmatprep.subr.mxu0 0.0
      %2062 = vmatpush2.msra.mxu0 0.0
      %2063 = vmatprep.subr.mxu0 0.0
      %2064 = vmatpush2.msra.mxu0 0.0
      %2065 = vmatprep.subr.mxu0 0.0
      %2066 = vmatpush2.msra.mxu0 0.0
      %2067 = vmatprep.subr.mxu0 0.0
      %2068 = vmatpush2.msra.mxu0 0.0
      %2069 = vmatprep.subr.mxu0 0.0
      %2070 = vmatpush2.msra.mxu0 0.0
      %2071 = vmatprep.subr.mxu0 0.0
      %2072 = vmatpush2.msra.mxu0 0.0
      %2073 = vmatprep.subr.mxu0 0.0
      %2074 = vmatpush2.msra.mxu0 0.0
      %2075 = vmatprep.subr.mxu0 0.0
      %2076 = vmatpush2.msra.mxu0 0.0
      %2077 = vmatprep.subr.mxu0 0.0
      %2078 = vmatpush2.msra.mxu0 0.0
      %2079 = vmatprep.subr.mxu0 0.0
      %2080 = vmatpush2.msra.mxu0 0.0
      %2081 = vmatprep.subr.mxu0 0.0
      %2082 = vmatpush2.msra.mxu0 0.0
      %2083 = vmatprep.subr.mxu0 0.0
      %2084 = vmatpush2.msra.mxu0 0.0
      %2085 = vmatprep.subr.mxu0 0.0
      %2086 = vmatpush2.msra.mxu0 0.0
      %2087 = vmatprep.subr.mxu0 0.0
      %2088 = vmatpush2.msra.mxu0 0.0
      %2089 = vmatprep.subr.mxu0 0.0
      %2090 = vmatpush2.msra.mxu0 0.0
      %2091 = vmatprep.mubr.f32.mxu0 0.0
      %2092 = vmatmul.mubr.f32.gmra.mxu0 %v1970
      %v2093 = vpop.f32.mrf.mxu0
      %v2094 = vadd.f32 %v2025, %v2093
      %v2095 = vpop.f32.mrf.mxu0
      %2096 = vmatprep.mubr.f32.mxu0 0.0
      %2097 = vmatmul.mubr.f32.gmra.mxu0 %v1971
      %v2098 = vpop.f32.mrf.mxu0
      %v2099 = vadd.f32 %v2025, %v2098
      %v2100 = vpop.f32.mrf.mxu0
      %2101 = vmatprep.mubr.f32.mxu0 0.0
      %2102 = vmatmul.mubr.f32.gmra.mxu0 %v1972
      %v2103 = vpop.f32.mrf.mxu0
      %v2104 = vadd.f32 %v2025, %v2103
      %v2105 = vpop.f32.mrf.mxu0
      %2106 = vmatprep.mubr.f32.mxu0 0.0
      %2107 = vmatmul.mubr.f32.gmra.mxu0 %v1973
      %v2108 = vpop.f32.mrf.mxu0
      %v2109 = vadd.f32 %v2025, %v2108
      %v2110 = vpop.f32.mrf.mxu0
      %2111 = vmatprep.mubr.f32.mxu0 0.0
      %2112 = vmatmul.mubr.f32.gmra.mxu0 %v1974
      %v2113 = vpop.f32.mrf.mxu0
      %v2114 = vadd.f32 %v2025, %v2113
      %v2115 = vpop.f32.mrf.mxu0
      %2116 = vmatprep.mubr.f32.mxu0 0.0
      %2117 = vmatmul.mubr.f32.gmra.mxu0 %v1975
      %v2118 = vpop.f32.mrf.mxu0
      %v2119 = vadd.f32 %v2025, %v2118
      %v2120 = vpop.f32.mrf.mxu0
      %2121 = vmatprep.mubr.f32.mxu0 0.0
      %2122 = vmatmul.mubr.f32.gmra.mxu0 %v1976
      %v2123 = vpop.f32.mrf.mxu0
      %v2124 = vadd.f32 %v2025, %v2123
      %v2125 = vpop.f32.mrf.mxu0
      %2126 = vmatprep.mubr.f32.mxu0 0.0
      %2127 = vmatmul.mubr.f32.gmra.mxu0 %v1977
      %v2128 = vpop.f32.mrf.mxu0
      %v2129 = vadd.f32 %v2025, %v2128
      %v2130 = vpop.f32.mrf.mxu0
      %2131 = vmatprep.mubr.f32.mxu0 0.0
      %2132 = vmatmul.mubr.f32.gmra.mxu0 %v1978
      %v2133 = vpop.f32.mrf.mxu0
      %v2134 = vadd.f32 %v2025, %v2133
      %v2135 = vpop.f32.mrf.mxu0
      %2136 = vmatprep.mubr.f32.mxu0 0.0
      %2137 = vmatmul.mubr.f32.gmra.mxu0 %v1979
      %v2138 = vpop.f32.mrf.mxu0
      %v2139 = vadd.f32 %v2025, %v2138
      %v2140 = vpop.f32.mrf.mxu0
      %2141 = vmatprep.mubr.f32.mxu0 0.0
      %2142 = vmatmul.mubr.f32.gmra.mxu0 %v1980
      %v2143 = vpop.f32.mrf.mxu0
      %v2144 = vadd.f32 %v2025, %v2143
      %v2145 = vpop.f32.mrf.mxu0
      %2146 = vmatprep.mubr.f32.mxu0 0.0
      %2147 = vmatmul.mubr.f32.gmra.mxu0 %v1981
      %v2148 = vpop.f32.mrf.mxu0
      %v2149 = vadd.f32 %v2025, %v2148
      %v2150 = vpop.f32.mrf.mxu0
      %2151 = vmatprep.mubr.f32.mxu0 0.0
      %2152 = vmatmul.mubr.f32.gmra.mxu0 %v1982
      %v2153 = vpop.f32.mrf.mxu0
      %v2154 = vadd.f32 %v2025, %v2153
      %v2155 = vpop.f32.mrf.mxu0
      %2156 = vmatprep.mubr.f32.mxu0 0.0
      %2157 = vmatmul.mubr.f32.gmra.mxu0 %v1983
      %v2158 = vpop.f32.mrf.mxu0
      %v2159 = vadd.f32 %v2025, %v2158
      %v2160 = vpop.f32.mrf.mxu0
      %2161 = vmatprep.mubr.f32.mxu0 0.0
      %2162 = vmatmul.mubr.f32.gmra.mxu0 %v1984
      %v2163 = vpop.f32.mrf.mxu0
      %v2164 = vadd.f32 %v2025, %v2163
      %v2165 = vpop.f32.mrf.mxu0
      %2166 = vmatprep.mubr.f32.mxu0 0.0
      %2167 = vmatmul.mubr.f32.gmra.mxu0 %v1985
      %v2168 = vpop.f32.mrf.mxu0
      %v2169 = vadd.f32 %v2025, %v2168
      %v2170 = vpop.f32.mrf.mxu0
      %2171 = vmatprep.mubr.f32.mxu0 0.0
      %2172 = vmatmul.mubr.f32.gmra.mxu0 %v1986
      %v2173 = vpop.f32.mrf.mxu0
      %v2174 = vadd.f32 %v2025, %v2173
      %v2175 = vpop.f32.mrf.mxu0
      %2176 = vmatprep.mubr.f32.mxu0 0.0
      %2177 = vmatmul.mubr.f32.gmra.mxu0 %v1987
      %v2178 = vpop.f32.mrf.mxu0
      %v2179 = vadd.f32 %v2025, %v2178
      %v2180 = vpop.f32.mrf.mxu0
      %2181 = vmatprep.mubr.f32.mxu0 0.0
      %2182 = vmatmul.mubr.f32.gmra.mxu0 %v1988
      %v2183 = vpop.f32.mrf.mxu0
      %v2184 = vadd.f32 %v2025, %v2183
      %v2185 = vpop.f32.mrf.mxu0
      %2186 = vmatprep.mubr.f32.mxu0 0.0
      %2187 = vmatmul.mubr.f32.gmra.mxu0 %v1989
      %v2188 = vpop.f32.mrf.mxu0
      %v2189 = vadd.f32 %v2025, %v2188
      %v2190 = vpop.f32.mrf.mxu0
      %2191 = vmatprep.mubr.f32.mxu0 0.0
      %2192 = vmatmul.mubr.f32.gmra.mxu0 %v1990
      %v2193 = vpop.f32.mrf.mxu0
      %v2194 = vadd.f32 %v2025, %v2193
      %v2195 = vpop.f32.mrf.mxu0
      %2196 = vmatprep.mubr.f32.mxu0 0.0
      %2197 = vmatmul.mubr.f32.gmra.mxu0 %v1991
      %v2198 = vpop.f32.mrf.mxu0
      %v2199 = vadd.f32 %v2025, %v2198
      %v2200 = vpop.f32.mrf.mxu0
      %2201 = vmatprep.mubr.f32.mxu0 0.0
      %2202 = vmatmul.mubr.f32.gmra.mxu0 %v1992
      %v2203 = vpop.f32.mrf.mxu0
      %v2204 = vadd.f32 %v2025, %v2203
      %v2205 = vpop.f32.mrf.mxu0
      %2206 = vmatprep.mubr.f32.mxu0 0.0
      %2207 = vmatmul.mubr.f32.gmra.mxu0 %v1993
      %v2208 = vpop.f32.mrf.mxu0
      %v2209 = vadd.f32 %v2025, %v2208
      %v2210 = vpop.f32.mrf.mxu0
      %2211 = vmatprep.mubr.f32.mxu0 0.0
      %2212 = vmatmul.mubr.f32.gmra.mxu0 %v1994
      %v2213 = vpop.f32.mrf.mxu0
      %v2214 = vadd.f32 %v2025, %v2213
      %v2215 = vpop.f32.mrf.mxu0
      %2216 = vmatprep.mubr.f32.mxu0 0.0
      %2217 = vmatmul.mubr.f32.gmra.mxu0 %v1995
      %v2218 = vpop.f32.mrf.mxu0
      %v2219 = vadd.f32 %v2025, %v2218
      %v2220 = vpop.f32.mrf.mxu0
      %2221 = vmatprep.mubr.f32.mxu0 0.0
      %2222 = vmatmul.mubr.f32.gmra.mxu0 %v1996
      %v2223 = vpop.f32.mrf.mxu0
      %v2224 = vadd.f32 %v2025, %v2223
      %v2225 = vpop.f32.mrf.mxu0
      %2226 = vmatprep.mubr.f32.mxu0 0.0
      %2227 = vmatmul.mubr.f32.gmra.mxu0 %v1997
      %v2228 = vpop.f32.mrf.mxu0
      %v2229 = vadd.f32 %v2025, %v2228
      %v2230 = vpop.f32.mrf.mxu0
      %2231 = vmatprep.mubr.f32.mxu0 0.0
      %2232 = vmatmul.mubr.f32.gmra.mxu0 %v1998
      %v2233 = vpop.f32.mrf.mxu0
      %v2234 = vadd.f32 %v2025, %v2233
      %v2235 = vpop.f32.mrf.mxu0
      %2236 = vmatprep.mubr.f32.mxu0 0.0
      %2237 = vmatmul.mubr.f32.gmra.mxu0 %v1999
      %v2238 = vpop.f32.mrf.mxu0
      %v2239 = vadd.f32 %v2025, %v2238
      %v2240 = vpop.f32.mrf.mxu0
      %2241 = vmatprep.mubr.f32.mxu0 0.0
      %2242 = vmatmul.mubr.f32.gmra.mxu0 %v2000
      %v2243 = vpop.f32.mrf.mxu0
      %v2244 = vadd.f32 %v2025, %v2243
      %v2245 = vpop.f32.mrf.mxu0
      %2246 = vmatprep.mubr.f32.mxu0 0.0
      %2247 = vmatmul.mubr.f32.gmra.mxu0 %v2001
      %v2248 = vpop.f32.mrf.mxu0
      %v2249 = vadd.f32 %v2025, %v2248
      %v2250 = vpop.f32.mrf.mxu0
      %2251 = vdwg.mxu0
      %v2252 = vtanh.pop %v2094
      %v2253 = vtanh.pop %v2099
      %v2254 = vtanh.pop %v2104
      %v2255 = vtanh.pop %v2109
      %v2256 = vtanh.pop %v2114
      %v2257 = vtanh.pop %v2119
      %v2258 = vtanh.pop %v2124
      %v2259 = vtanh.pop %v2129
      %v2260 = vtanh.pop %v2134
      %v2261 = vtanh.pop %v2139
      %v2262 = vtanh.pop %v2144
      %v2263 = vtanh.pop %v2149
      %v2264 = vtanh.pop %v2154
      %v2265 = vtanh.pop %v2159
      %v2266 = vtanh.pop %v2164
      %v2267 = vtanh.pop %v2169
      %v2268 = vtanh.pop %v2174
      %v2269 = vtanh.pop %v2179
      %v2270 = vtanh.pop %v2184
      %v2271 = vtanh.pop %v2189
      %v2272 = vtanh.pop %v2194
      %v2273 = vtanh.pop %v2199
      %v2274 = vtanh.pop %v2204
      %v2275 = vtanh.pop %v2209
      %v2276 = vtanh.pop %v2214
      %v2277 = vtanh.pop %v2219
      %v2278 = vtanh.pop %v2224
      %v2279 = vtanh.pop %v2229
      %v2280 = vtanh.pop %v2234
      %v2281 = vtanh.pop %v2239
      %v2282 = vtanh.pop %v2244
      %v2283 = vtanh.pop %v2249
      %v2284 = vadd.f32 %v2252, %v1688
      %v2285 = vadd.f32 %v2253, %v1689
      %v2286 = vadd.f32 %v2254, %v1690
      %v2287 = vadd.f32 %v2255, %v1691
      %v2288 = vadd.f32 %v2256, %v1692
      %v2289 = vadd.f32 %v2257, %v1693
      %v2290 = vadd.f32 %v2258, %v1694
      %v2291 = vadd.f32 %v2259, %v1695
      %v2292 = vadd.f32 %v2260, %v1696
      %v2293 = vadd.f32 %v2261, %v1697
      %v2294 = vadd.f32 %v2262, %v1698
      %v2295 = vadd.f32 %v2263, %v1699
      %v2296 = vadd.f32 %v2264, %v1700
      %v2297 = vadd.f32 %v2265, %v1701
      %v2298 = vadd.f32 %v2266, %v1702
      %v2299 = vadd.f32 %v2267, %v1703
      %v2300 = vadd.f32 %v2268, %v1704
      %v2301 = vadd.f32 %v2269, %v1705
      %v2302 = vadd.f32 %v2270, %v1706
      %v2303 = vadd.f32 %v2271, %v1707
      %v2304 = vadd.f32 %v2272, %v1708
      %v2305 = vadd.f32 %v2273, %v1709
      %v2306 = vadd.f32 %v2274, %v1710
      %v2307 = vadd.f32 %v2275, %v1711
      %v2308 = vadd.f32 %v2276, %v1712
      %v2309 = vadd.f32 %v2277, %v1713
      %v2310 = vadd.f32 %v2278, %v1714
      %v2311 = vadd.f32 %v2279, %v1715
      %v2312 = vadd.f32 %v2280, %v1716
      %v2313 = vadd.f32 %v2281, %v1717
      %v2314 = vadd.f32 %v2282, %v1718
      %v2315 = vadd.f32 %v2283, %v1719
      %v2316 = vld [vmem:[%s7] sm:$0xff]
      %v2317 = vld [vmem:[%s7 + $0x8] sm:$0xff]
      %v2318 = vld [vmem:[%s7 + $0x10] sm:$0xff]
      %v2319 = vld [vmem:[%s7 + $0x18] sm:$0xff]
      %v2320 = vld [vmem:[%s7 + $0x20] sm:$0xff]
      %v2321 = vld [vmem:[%s7 + $0x28] sm:$0xff]
      %v2322 = vld [vmem:[%s7 + $0x30] sm:$0xff]
      %v2323 = vld [vmem:[%s7 + $0x38] sm:$0xff]
      %v2324 = vld [vmem:[%s7 + $0x40] sm:$0xff]
      %v2325 = vld [vmem:[%s7 + $0x48] sm:$0xff]
      %v2326 = vld [vmem:[%s7 + $0x50] sm:$0xff]
      %v2327 = vld [vmem:[%s7 + $0x58] sm:$0xff]
      %v2328 = vld [vmem:[%s7 + $0x60] sm:$0xff]
      %v2329 = vld [vmem:[%s7 + $0x68] sm:$0xff]
      %v2330 = vld [vmem:[%s7 + $0x70] sm:$0xff]
      %v2331 = vld [vmem:[%s7 + $0x78] sm:$0xff]
      %v2332 = vld [vmem:[%s8] sm:$0x1]
      %v2334 = vlaneseq
      %v2335 = vshrl.u32 %v2334, 7
      %v2336 = vsub.s32 0, %v2335
      %v2337 = vrot.slane %v2332, %v2336
      %2339 = vmatprep.subr.mxu0 0.0
      %2340 = vmatpush1.msra.mxu0 %v2331
      %2341 = vmatprep.subr.mxu0 0.0
      %2342 = vmatpush1.msra.mxu0 %v2330
      %2343 = vmatprep.subr.mxu0 0.0
      %2344 = vmatpush1.msra.mxu0 %v2329
      %2345 = vmatprep.subr.mxu0 0.0
      %2346 = vmatpush1.msra.mxu0 %v2328
      %2347 = vmatprep.subr.mxu0 0.0
      %2348 = vmatpush1.msra.mxu0 %v2327
      %2349 = vmatprep.subr.mxu0 0.0
      %2350 = vmatpush1.msra.mxu0 %v2326
      %2351 = vmatprep.subr.mxu0 0.0
      %2352 = vmatpush1.msra.mxu0 %v2325
      %2353 = vmatprep.subr.mxu0 0.0
      %2354 = vmatpush1.msra.mxu0 %v2324
      %2355 = vmatprep.subr.mxu0 0.0
      %2356 = vmatpush1.msra.mxu0 %v2323
      %2357 = vmatprep.subr.mxu0 0.0
      %2358 = vmatpush1.msra.mxu0 %v2322
      %2359 = vmatprep.subr.mxu0 0.0
      %2360 = vmatpush1.msra.mxu0 %v2321
      %2361 = vmatprep.subr.mxu0 0.0
      %2362 = vmatpush1.msra.mxu0 %v2320
      %2363 = vmatprep.subr.mxu0 0.0
      %2364 = vmatpush1.msra.mxu0 %v2319
      %2365 = vmatprep.subr.mxu0 0.0
      %2366 = vmatpush1.msra.mxu0 %v2318
      %2367 = vmatprep.subr.mxu0 0.0
      %2368 = vmatpush1.msra.mxu0 %v2317
      %2369 = vmatprep.subr.mxu0 0.0
      %2370 = vmatpush1.msra.mxu0 %v2316
      %2371 = vmatprep.subr.mxu0 0.0
      %2372 = vmatpush2.msra.mxu0 0.0
      %2373 = vmatprep.subr.mxu0 0.0
      %2374 = vmatpush2.msra.mxu0 0.0
      %2375 = vmatprep.subr.mxu0 0.0
      %2376 = vmatpush2.msra.mxu0 0.0
      %2377 = vmatprep.subr.mxu0 0.0
      %2378 = vmatpush2.msra.mxu0 0.0
      %2379 = vmatprep.subr.mxu0 0.0
      %2380 = vmatpush2.msra.mxu0 0.0
      %2381 = vmatprep.subr.mxu0 0.0
      %2382 = vmatpush2.msra.mxu0 0.0
      %2383 = vmatprep.subr.mxu0 0.0
      %2384 = vmatpush2.msra.mxu0 0.0
      %2385 = vmatprep.subr.mxu0 0.0
      %2386 = vmatpush2.msra.mxu0 0.0
      %2387 = vmatprep.subr.mxu0 0.0
      %2388 = vmatpush2.msra.mxu0 0.0
      %2389 = vmatprep.subr.mxu0 0.0
      %2390 = vmatpush2.msra.mxu0 0.0
      %2391 = vmatprep.subr.mxu0 0.0
      %2392 = vmatpush2.msra.mxu0 0.0
      %2393 = vmatprep.subr.mxu0 0.0
      %2394 = vmatpush2.msra.mxu0 0.0
      %2395 = vmatprep.subr.mxu0 0.0
      %2396 = vmatpush2.msra.mxu0 0.0
      %2397 = vmatprep.subr.mxu0 0.0
      %2398 = vmatpush2.msra.mxu0 0.0
      %2399 = vmatprep.subr.mxu0 0.0
      %2400 = vmatpush2.msra.mxu0 0.0
      %2401 = vmatprep.subr.mxu0 0.0
      %2402 = vmatpush2.msra.mxu0 0.0
      %2403 = vmatprep.mubr.f32.mxu0 0.0
      %2404 = vmatmul.mubr.f32.gmra.mxu0 %v2284
      %v2405 = vpop.f32.mrf.mxu0
      %v2406 = vadd.f32 %v2337, %v2405
      %v2407 = vpop.f32.mrf.mxu0
      %2408 = vmatprep.mubr.f32.mxu0 0.0
      %2409 = vmatmul.mubr.f32.gmra.mxu0 %v2285
      %v2410 = vpop.f32.mrf.mxu0
      %v2411 = vadd.f32 %v2337, %v2410
      %v2412 = vpop.f32.mrf.mxu0
      %2413 = vmatprep.mubr.f32.mxu0 0.0
      %2414 = vmatmul.mubr.f32.gmra.mxu0 %v2286
      %v2415 = vpop.f32.mrf.mxu0
      %v2416 = vadd.f32 %v2337, %v2415
      %v2417 = vpop.f32.mrf.mxu0
      %2418 = vmatprep.mubr.f32.mxu0 0.0
      %2419 = vmatmul.mubr.f32.gmra.mxu0 %v2287
      %v2420 = vpop.f32.mrf.mxu0
      %v2421 = vadd.f32 %v2337, %v2420
      %v2422 = vpop.f32.mrf.mxu0
      %2423 = vmatprep.mubr.f32.mxu0 0.0
      %2424 = vmatmul.mubr.f32.gmra.mxu0 %v2288
      %v2425 = vpop.f32.mrf.mxu0
      %v2426 = vadd.f32 %v2337, %v2425
      %v2427 = vpop.f32.mrf.mxu0
      %2428 = vmatprep.mubr.f32.mxu0 0.0
      %2429 = vmatmul.mubr.f32.gmra.mxu0 %v2289
      %v2430 = vpop.f32.mrf.mxu0
      %v2431 = vadd.f32 %v2337, %v2430
      %v2432 = vpop.f32.mrf.mxu0
      %2433 = vmatprep.mubr.f32.mxu0 0.0
      %2434 = vmatmul.mubr.f32.gmra.mxu0 %v2290
      %v2435 = vpop.f32.mrf.mxu0
      %v2436 = vadd.f32 %v2337, %v2435
      %v2437 = vpop.f32.mrf.mxu0
      %2438 = vmatprep.mubr.f32.mxu0 0.0
      %2439 = vmatmul.mubr.f32.gmra.mxu0 %v2291
      %v2440 = vpop.f32.mrf.mxu0
      %v2441 = vadd.f32 %v2337, %v2440
      %v2442 = vpop.f32.mrf.mxu0
      %2443 = vmatprep.mubr.f32.mxu0 0.0
      %2444 = vmatmul.mubr.f32.gmra.mxu0 %v2292
      %v2445 = vpop.f32.mrf.mxu0
      %v2446 = vadd.f32 %v2337, %v2445
      %v2447 = vpop.f32.mrf.mxu0
      %2448 = vmatprep.mubr.f32.mxu0 0.0
      %2449 = vmatmul.mubr.f32.gmra.mxu0 %v2293
      %v2450 = vpop.f32.mrf.mxu0
      %v2451 = vadd.f32 %v2337, %v2450
      %v2452 = vpop.f32.mrf.mxu0
      %2453 = vmatprep.mubr.f32.mxu0 0.0
      %2454 = vmatmul.mubr.f32.gmra.mxu0 %v2294
      %v2455 = vpop.f32.mrf.mxu0
      %v2456 = vadd.f32 %v2337, %v2455
      %v2457 = vpop.f32.mrf.mxu0
      %2458 = vmatprep.mubr.f32.mxu0 0.0
      %2459 = vmatmul.mubr.f32.gmra.mxu0 %v2295
      %v2460 = vpop.f32.mrf.mxu0
      %v2461 = vadd.f32 %v2337, %v2460
      %v2462 = vpop.f32.mrf.mxu0
      %2463 = vmatprep.mubr.f32.mxu0 0.0
      %2464 = vmatmul.mubr.f32.gmra.mxu0 %v2296
      %v2465 = vpop.f32.mrf.mxu0
      %v2466 = vadd.f32 %v2337, %v2465
      %v2467 = vpop.f32.mrf.mxu0
      %2468 = vmatprep.mubr.f32.mxu0 0.0
      %2469 = vmatmul.mubr.f32.gmra.mxu0 %v2297
      %v2470 = vpop.f32.mrf.mxu0
      %v2471 = vadd.f32 %v2337, %v2470
      %v2472 = vpop.f32.mrf.mxu0
      %2473 = vmatprep.mubr.f32.mxu0 0.0
      %2474 = vmatmul.mubr.f32.gmra.mxu0 %v2298
      %v2475 = vpop.f32.mrf.mxu0
      %v2476 = vadd.f32 %v2337, %v2475
      %v2477 = vpop.f32.mrf.mxu0
      %2478 = vmatprep.mubr.f32.mxu0 0.0
      %2479 = vmatmul.mubr.f32.gmra.mxu0 %v2299
      %v2480 = vpop.f32.mrf.mxu0
      %v2481 = vadd.f32 %v2337, %v2480
      %v2482 = vpop.f32.mrf.mxu0
      %2483 = vmatprep.mubr.f32.mxu0 0.0
      %2484 = vmatmul.mubr.f32.gmra.mxu0 %v2300
      %v2485 = vpop.f32.mrf.mxu0
      %v2486 = vadd.f32 %v2337, %v2485
      %v2487 = vpop.f32.mrf.mxu0
      %2488 = vmatprep.mubr.f32.mxu0 0.0
      %2489 = vmatmul.mubr.f32.gmra.mxu0 %v2301
      %v2490 = vpop.f32.mrf.mxu0
      %v2491 = vadd.f32 %v2337, %v2490
      %v2492 = vpop.f32.mrf.mxu0
      %2493 = vmatprep.mubr.f32.mxu0 0.0
      %2494 = vmatmul.mubr.f32.gmra.mxu0 %v2302
      %v2495 = vpop.f32.mrf.mxu0
      %v2496 = vadd.f32 %v2337, %v2495
      %v2497 = vpop.f32.mrf.mxu0
      %2498 = vmatprep.mubr.f32.mxu0 0.0
      %2499 = vmatmul.mubr.f32.gmra.mxu0 %v2303
      %v2500 = vpop.f32.mrf.mxu0
      %v2501 = vadd.f32 %v2337, %v2500
      %v2502 = vpop.f32.mrf.mxu0
      %2503 = vmatprep.mubr.f32.mxu0 0.0
      %2504 = vmatmul.mubr.f32.gmra.mxu0 %v2304
      %v2505 = vpop.f32.mrf.mxu0
      %v2506 = vadd.f32 %v2337, %v2505
      %v2507 = vpop.f32.mrf.mxu0
      %2508 = vmatprep.mubr.f32.mxu0 0.0
      %2509 = vmatmul.mubr.f32.gmra.mxu0 %v2305
      %v2510 = vpop.f32.mrf.mxu0
      %v2511 = vadd.f32 %v2337, %v2510
      %v2512 = vpop.f32.mrf.mxu0
      %2513 = vmatprep.mubr.f32.mxu0 0.0
      %2514 = vmatmul.mubr.f32.gmra.mxu0 %v2306
      %v2515 = vpop.f32.mrf.mxu0
      %v2516 = vadd.f32 %v2337, %v2515
      %v2517 = vpop.f32.mrf.mxu0
      %2518 = vmatprep.mubr.f32.mxu0 0.0
      %2519 = vmatmul.mubr.f32.gmra.mxu0 %v2307
      %v2520 = vpop.f32.mrf.mxu0
      %v2521 = vadd.f32 %v2337, %v2520
      %v2522 = vpop.f32.mrf.mxu0
      %2523 = vmatprep.mubr.f32.mxu0 0.0
      %2524 = vmatmul.mubr.f32.gmra.mxu0 %v2308
      %v2525 = vpop.f32.mrf.mxu0
      %v2526 = vadd.f32 %v2337, %v2525
      %v2527 = vpop.f32.mrf.mxu0
      %2528 = vmatprep.mubr.f32.mxu0 0.0
      %2529 = vmatmul.mubr.f32.gmra.mxu0 %v2309
      %v2530 = vpop.f32.mrf.mxu0
      %v2531 = vadd.f32 %v2337, %v2530
      %v2532 = vpop.f32.mrf.mxu0
      %2533 = vmatprep.mubr.f32.mxu0 0.0
      %2534 = vmatmul.mubr.f32.gmra.mxu0 %v2310
      %v2535 = vpop.f32.mrf.mxu0
      %v2536 = vadd.f32 %v2337, %v2535
      %v2537 = vpop.f32.mrf.mxu0
      %2538 = vmatprep.mubr.f32.mxu0 0.0
      %2539 = vmatmul.mubr.f32.gmra.mxu0 %v2311
      %v2540 = vpop.f32.mrf.mxu0
      %v2541 = vadd.f32 %v2337, %v2540
      %v2542 = vpop.f32.mrf.mxu0
      %2543 = vmatprep.mubr.f32.mxu0 0.0
      %2544 = vmatmul.mubr.f32.gmra.mxu0 %v2312
      %v2545 = vpop.f32.mrf.mxu0
      %v2546 = vadd.f32 %v2337, %v2545
      %v2547 = vpop.f32.mrf.mxu0
      %2548 = vmatprep.mubr.f32.mxu0 0.0
      %2549 = vmatmul.mubr.f32.gmra.mxu0 %v2313
      %v2550 = vpop.f32.mrf.mxu0
      %v2551 = vadd.f32 %v2337, %v2550
      %v2552 = vpop.f32.mrf.mxu0
      %2553 = vmatprep.mubr.f32.mxu0 0.0
      %2554 = vmatmul.mubr.f32.gmra.mxu0 %v2314
      %v2555 = vpop.f32.mrf.mxu0
      %v2556 = vadd.f32 %v2337, %v2555
      %v2557 = vpop.f32.mrf.mxu0
      %2558 = vmatprep.mubr.f32.mxu0 0.0
      %2559 = vmatmul.mubr.f32.gmra.mxu0 %v2315
      %v2560 = vpop.f32.mrf.mxu0
      %v2561 = vadd.f32 %v2337, %v2560
      %v2562 = vpop.f32.mrf.mxu0
      %2563 = vdwg.mxu0
      %2565 = vset.pattern.permute.xlu0 0
      %2566 = vperm.xlu0 %2565, %v848
      %v2567 = vpop.permute.xlu0 %2566
      %2570 = vset.pattern.permute.xlu0 0
      %2571 = vperm.xlu0 %2570, %v849
      %v2572 = vpop.permute.xlu0 %2571
      %2575 = vset.pattern.permute.xlu0 0
      %2576 = vperm.xlu0 %2575, %v850
      %v2577 = vpop.permute.xlu0 %2576
      %2580 = vset.pattern.permute.xlu0 0
      %2581 = vperm.xlu0 %2580, %v851
      %v2582 = vpop.permute.xlu0 %2581
      %2585 = vset.pattern.permute.xlu0 0
      %2586 = vperm.xlu0 %2585, %v852
      %v2587 = vpop.permute.xlu0 %2586
      %2590 = vset.pattern.permute.xlu0 0
      %2591 = vperm.xlu0 %2590, %v853
      %v2592 = vpop.permute.xlu0 %2591
      %2595 = vset.pattern.permute.xlu0 0
      %2596 = vperm.xlu0 %2595, %v854
      %v2597 = vpop.permute.xlu0 %2596
      %2600 = vset.pattern.permute.xlu0 0
      %2601 = vperm.xlu0 %2600, %v855
      %v2602 = vpop.permute.xlu0 %2601
      %2605 = vset.pattern.permute.xlu0 0
      %2606 = vperm.xlu0 %2605, %v856
      %v2607 = vpop.permute.xlu0 %2606
      %2610 = vset.pattern.permute.xlu0 0
      %2611 = vperm.xlu0 %2610, %v857
      %v2612 = vpop.permute.xlu0 %2611
      %2615 = vset.pattern.permute.xlu0 0
      %2616 = vperm.xlu0 %2615, %v858
      %v2617 = vpop.permute.xlu0 %2616
      %2620 = vset.pattern.permute.xlu0 0
      %2621 = vperm.xlu0 %2620, %v859
      %v2622 = vpop.permute.xlu0 %2621
      %2625 = vset.pattern.permute.xlu0 0
      %2626 = vperm.xlu0 %2625, %v860
      %v2627 = vpop.permute.xlu0 %2626
      %2630 = vset.pattern.permute.xlu0 0
      %2631 = vperm.xlu0 %2630, %v861
      %v2632 = vpop.permute.xlu0 %2631
      %2635 = vset.pattern.permute.xlu0 0
      %2636 = vperm.xlu0 %2635, %v862
      %v2637 = vpop.permute.xlu0 %2636
      %2640 = vset.pattern.permute.xlu0 0
      %2641 = vperm.xlu0 %2640, %v863
      %v2642 = vpop.permute.xlu0 %2641
      %2645 = vset.pattern.permute.xlu0 0
      %2646 = vperm.xlu0 %2645, %v864
      %v2647 = vpop.permute.xlu0 %2646
      %2650 = vset.pattern.permute.xlu0 0
      %2651 = vperm.xlu0 %2650, %v865
      %v2652 = vpop.permute.xlu0 %2651
      %2655 = vset.pattern.permute.xlu0 0
      %2656 = vperm.xlu0 %2655, %v866
      %v2657 = vpop.permute.xlu0 %2656
      %2660 = vset.pattern.permute.xlu0 0
      %2661 = vperm.xlu0 %2660, %v867
      %v2662 = vpop.permute.xlu0 %2661
      %2665 = vset.pattern.permute.xlu0 0
      %2666 = vperm.xlu0 %2665, %v868
      %v2667 = vpop.permute.xlu0 %2666
      %2670 = vset.pattern.permute.xlu0 0
      %2671 = vperm.xlu0 %2670, %v869
      %v2672 = vpop.permute.xlu0 %2671
      %2675 = vset.pattern.permute.xlu0 0
      %2676 = vperm.xlu0 %2675, %v870
      %v2677 = vpop.permute.xlu0 %2676
      %2680 = vset.pattern.permute.xlu0 0
      %2681 = vperm.xlu0 %2680, %v871
      %v2682 = vpop.permute.xlu0 %2681
      %2685 = vset.pattern.permute.xlu0 0
      %2686 = vperm.xlu0 %2685, %v872
      %v2687 = vpop.permute.xlu0 %2686
      %2690 = vset.pattern.permute.xlu0 0
      %2691 = vperm.xlu0 %2690, %v873
      %v2692 = vpop.permute.xlu0 %2691
      %2695 = vset.pattern.permute.xlu0 0
      %2696 = vperm.xlu0 %2695, %v874
      %v2697 = vpop.permute.xlu0 %2696
      %2700 = vset.pattern.permute.xlu0 0
      %2701 = vperm.xlu0 %2700, %v875
      %v2702 = vpop.permute.xlu0 %2701
      %2705 = vset.pattern.permute.xlu0 0
      %2706 = vperm.xlu0 %2705, %v876
      %v2707 = vpop.permute.xlu0 %2706
      %2710 = vset.pattern.permute.xlu0 0
      %2711 = vperm.xlu0 %2710, %v877
      %v2712 = vpop.permute.xlu0 %2711
      %2715 = vset.pattern.permute.xlu0 0
      %2716 = vperm.xlu0 %2715, %v878
      %v2717 = vpop.permute.xlu0 %2716
      %2720 = vset.pattern.permute.xlu0 0
      %2721 = vperm.xlu0 %2720, %v879
      %v2722 = vpop.permute.xlu0 %2721
      %v2724 = vmul.f32 %v2406, %v2567
      %v2725 = vmul.f32 %v2411, %v2572
      %v2726 = vmul.f32 %v2416, %v2577
      %v2727 = vmul.f32 %v2421, %v2582
      %v2728 = vmul.f32 %v2426, %v2587
      %v2729 = vmul.f32 %v2431, %v2592
      %v2730 = vmul.f32 %v2436, %v2597
      %v2731 = vmul.f32 %v2441, %v2602
      %v2732 = vmul.f32 %v2446, %v2607
      %v2733 = vmul.f32 %v2451, %v2612
      %v2734 = vmul.f32 %v2456, %v2617
      %v2735 = vmul.f32 %v2461, %v2622
      %v2736 = vmul.f32 %v2466, %v2627
      %v2737 = vmul.f32 %v2471, %v2632
      %v2738 = vmul.f32 %v2476, %v2637
      %v2739 = vmul.f32 %v2481, %v2642
      %v2740 = vmul.f32 %v2486, %v2647
      %v2741 = vmul.f32 %v2491, %v2652
      %v2742 = vmul.f32 %v2496, %v2657
      %v2743 = vmul.f32 %v2501, %v2662
      %v2744 = vmul.f32 %v2506, %v2667
      %v2745 = vmul.f32 %v2511, %v2672
      %v2746 = vmul.f32 %v2516, %v2677
      %v2747 = vmul.f32 %v2521, %v2682
      %v2748 = vmul.f32 %v2526, %v2687
      %v2749 = vmul.f32 %v2531, %v2692
      %v2750 = vmul.f32 %v2536, %v2697
      %v2751 = vmul.f32 %v2541, %v2702
      %v2752 = vmul.f32 %v2546, %v2707
      %v2753 = vmul.f32 %v2551, %v2712
      %v2754 = vmul.f32 %v2556, %v2717
      %v2755 = vmul.f32 %v2561, %v2722
      %2756 = vst [vmem:[%s334] sm:$0xff] %v2724
      %2757 = vst [vmem:[%s334 + $0x8] sm:$0xff] %v2725
      %2758 = vst [vmem:[%s334 + $0x10] sm:$0xff] %v2726
      %2759 = vst [vmem:[%s334 + $0x18] sm:$0xff] %v2727
      %2760 = vst [vmem:[%s334 + $0x20] sm:$0xff] %v2728
      %2761 = vst [vmem:[%s334 + $0x28] sm:$0xff] %v2729
      %2762 = vst [vmem:[%s334 + $0x30] sm:$0xff] %v2730
      %2763 = vst [vmem:[%s334 + $0x38] sm:$0xff] %v2731
      %2764 = vst [vmem:[%s334 + $0x40] sm:$0xff] %v2732
      %2765 = vst [vmem:[%s334 + $0x48] sm:$0xff] %v2733
      %2766 = vst [vmem:[%s334 + $0x50] sm:$0xff] %v2734
      %2767 = vst [vmem:[%s334 + $0x58] sm:$0xff] %v2735
      %2768 = vst [vmem:[%s334 + $0x60] sm:$0xff] %v2736
      %2769 = vst [vmem:[%s334 + $0x68] sm:$0xff] %v2737
      %2770 = vst [vmem:[%s334 + $0x70] sm:$0xff] %v2738
      %2771 = vst [vmem:[%s334 + $0x78] sm:$0xff] %v2739
      %2772 = vst [vmem:[%s334 + $0x80] sm:$0xff] %v2740
      %2773 = vst [vmem:[%s334 + $0x88] sm:$0xff] %v2741
      %2774 = vst [vmem:[%s334 + $0x90] sm:$0xff] %v2742
      %2775 = vst [vmem:[%s334 + $0x98] sm:$0xff] %v2743
      %2776 = vst [vmem:[%s334 + $0xa0] sm:$0xff] %v2744
      %2777 = vst [vmem:[%s334 + $0xa8] sm:$0xff] %v2745
      %2778 = vst [vmem:[%s334 + $0xb0] sm:$0xff] %v2746
      %2779 = vst [vmem:[%s334 + $0xb8] sm:$0xff] %v2747
      %2780 = vst [vmem:[%s334 + $0xc0] sm:$0xff] %v2748
      %2781 = vst [vmem:[%s334 + $0xc8] sm:$0xff] %v2749
      %2782 = vst [vmem:[%s334 + $0xd0] sm:$0xff] %v2750
      %2783 = vst [vmem:[%s334 + $0xd8] sm:$0xff] %v2751
      %2784 = vst [vmem:[%s334 + $0xe0] sm:$0xff] %v2752
      %2785 = vst [vmem:[%s334 + $0xe8] sm:$0xff] %v2753
      %2786 = vst [vmem:[%s334 + $0xf0] sm:$0xff] %v2754
      %2787 = vst [vmem:[%s334 + $0xf8] sm:$0xff] %v2755
      %s2788 = smul.u32 32, %s20
      %p2789 = scmp.lt.s32.totalorder %s2788, 63
      %s2790 = scalar_select %p2789, %s2788, 63
      %s2791 = smul.addr %s2790, 8
      %s2792 = scalar_lea.vmem %s9, %s2791
      // Predicated region
      $region57: #{drrnn_forward.1} parent=55 // pred_check
        %p2793 = pneg %p232
      $region58: #{drrnn_forward.1} parent=55 // pred_check_branch
        %2795 = sbr.rel (%p2793) target = $region60
      $region59: #{drrnn_forward.1} parent=55 // pred_region
        %s2796 = smul.u32 32, %s20
      $region60: #{drrnn_forward.1} parent=55 // pred_fallthru
        _
    $region56: #{drrnn_forward.1} parent=5 // pred_fallthru
      _
    %p2797 = scmp.le.s32.totalorder 2, %s15
    // Predicated region
    $region61: #{drrnn_forward.1} parent=5 // pred_check
      %p2798 = pneg %p2797
    $region62: #{drrnn_forward.1} parent=5 // pred_check_branch
      %2800 = sbr.rel (%p2798) target = $region64
    $region63: #{drrnn_forward.1} parent=5 // pred_region
      %s2801 = ssub.s32 %s15, 2
      // Predicated region
      $region65: #{drrnn_forward.1} parent=63 // pred_check
        %p2802 = pneg %p238
      $region66: #{drrnn_forward.1} parent=63 // pred_check_branch
        %2804 = sbr.rel (%p2802) target = $region68
      $region67: #{drrnn_forward.1} parent=63 // pred_region
        %s2805 = smul.u32 32, %s21
        %p2806 = scmp.lt.s32.totalorder %s2805, 63
        %s2807 = scalar_select %p2806, %s2805, 63
        %s2808 = smul.addr %s2807, 8
        %s2809 = scalar_lea.vmem %s9, %s2808
      $region68: #{drrnn_forward.1} parent=63 // pred_fallthru
        _
    $region64: #{drrnn_forward.1} parent=5 // pred_fallthru
      _
  $region6: #{drrnn_forward.1} parent=0 // loop_footer
    %s19 = sadd.s32 1, %s15
  $region7: #{drrnn_forward.1} parent=0 // loop_footer_branch
    %14 = sbr.rel target = $region3
  $region8: #{drrnn_forward.1} parent=0 // loop_exit
    _

</llo_original>
